<compile_context>
chip_gen: v5e
topology: v5e:2x2
jax: 0.10.0
libtpu: 0.0.40
codegen_flags: <defaults>
</compile_context>

<pallas_src>
import functools
import math

import jax
import jax.numpy as jnp
from jax.experimental import pallas as pl
from jax.experimental.pallas import tpu as pltpu

K = 3          # conv kernel size (fixed by the module: kernel_size=3)
SLOPE = 0.01   # torch.nn.LeakyReLU default negative_slope


def _leaky(x):
    return jnp.where(x > 0, x, SLOPE * x)


def _relu(x):
    return jnp.maximum(x, 0.0)


# ----------------------------------------------------------------------------
# Fused kernel: 4 causal-conv residual blocks + max-pool + critic MLP head.
# ----------------------------------------------------------------------------
def fused_critic_kernel(obs_ref, act_ref, w_ref, b_ref, o_ref, s_ref, *,
                        blk_cfgs, head_cfg, T, maxpad, c_max):
    Bt, _, obs_dim = obs_ref.shape
    M = Bt * T

    # Zero the causal left-pad rows once; data stores never touch them.
    s_ref[:, :maxpad, :] = jnp.zeros((Bt, maxpad, c_max), jnp.float32)
    # Stage the time-major observation below the zero pad.
    s_ref[:, maxpad:maxpad + T, :obs_dim] = obs_ref[...]

    def taps_and_cat(c, shifts):
        """Read the causally shifted windows from the zero-padded staging
        buffer and concatenate them along the contraction dim so the whole
        dilated conv is ONE MXU matmul against the pre-stacked weight."""
        taps = [s_ref[:, maxpad - s:maxpad - s + T, :c] for s in shifts]
        cat = taps[0] if len(taps) == 1 else jnp.concatenate(taps, axis=-1)
        return taps, cat.reshape(M, len(taps) * c)

    def bias(row, width):
        return b_ref[row:row + 1, :width]

    y = None
    n_blocks = len(blk_cfgs)
    for i, cfg in enumerate(blk_cfgs):
        c_in, c_out, shifts = cfg["c_in"], cfg["c_out"], cfg["shifts"]

        # conv1 (+ fused 1x1-conv residual columns): one matmul.
        taps, x1 = taps_and_cat(c_in, shifts)
        w1 = w_ref[:cfg["w1_rows"], cfg["w1_off"]:cfg["w1_off"] + cfg["w1_cols"]]
        z1 = (jnp.dot(x1, w1, preferred_element_type=jnp.float32)
              + bias(cfg["b1_row"], cfg["w1_cols"]))
        h1 = _leaky(z1[:, :c_out])
        if cfg["has_res"]:
            res = z1[:, c_out:]                    # x @ wres + bres (fused)
        else:
            res = taps[-1].reshape(M, c_in)        # identity skip (shift-0 tap)

        # conv2: one matmul (h1 staged for its shifted reads).
        s_ref[:, maxpad:maxpad + T, :c_out] = h1.reshape(Bt, T, c_out)
        _, x2 = taps_and_cat(c_out, shifts)
        w2 = w_ref[:cfg["w2_rows"], cfg["w2_off"]:cfg["w2_off"] + c_out]
        h2 = _leaky(jnp.dot(x2, w2, preferred_element_type=jnp.float32)
                    + bias(cfg["b2_row"], c_out))
        y = h2 + res                               # [Bt*T, c_out]

        if i < n_blocks - 1:                       # stage next block's input
            s_ref[:, maxpad:maxpad + T, :c_out] = y.reshape(Bt, T, c_out)

    # Encoder head + critic MLP, all register/VMEM resident.
    hidden, act_dim = head_cfg["hidden"], head_cfg["act_dim"]
    pooled = jnp.max(y.reshape(Bt, T, hidden), axis=1)     # AdaptiveMaxPool1d(1)
    # enc = pooled @ wl + bl ; a = act @ wa + ba  -> one fused matmul.
    hx = jnp.concatenate([pooled, act_ref[...]], axis=-1)  # [Bt, hidden+act_dim]
    wh = w_ref[:hidden + act_dim, head_cfg["wh_off"]:head_cfg["wh_off"] + hidden]
    h = _relu(jnp.dot(hx, wh, preferred_element_type=jnp.float32)
              + bias(head_cfg["bh_row"], hidden))
    wn1 = w_ref[:hidden, head_cfg["n1_off"]:head_cfg["n1_off"] + hidden]
    h = _relu(jnp.dot(h, wn1, preferred_element_type=jnp.float32)
              + bias(head_cfg["bn1_row"], hidden))
    wn2 = w_ref[:hidden, head_cfg["n2_off"]:head_cfg["n2_off"] + hidden]
    h = _relu(jnp.dot(h, wn2, preferred_element_type=jnp.float32)
              + bias(head_cfg["bn2_row"], hidden))
    wn3 = w_ref[:hidden, head_cfg["n3_off"]:head_cfg["n3_off"] + 1]
    q = jnp.dot(h, wn3, preferred_element_type=jnp.float32) + bias(head_cfg["bn3_row"], 1)
    o_ref[...] = jnp.broadcast_to(q, (Bt, 128))             # lane-dense store


# ----------------------------------------------------------------------------
# Wrapper-side operand packing: one weight slab + one bias slab (4 input DMAs).
# (In a training loop this packing could be cached across steps; it is tiny.)
# ----------------------------------------------------------------------------
def _pack_operands(params, T):
    blocks = params["blocks"]
    hidden = int(params["wl"].shape[0])
    act_dim = int(params["wa"].shape[0])

    mats = []
    col = [0]

    def add_w(m):
        off = col[0]
        mats.append(m)
        col[0] += int(m.shape[1])
        return off

    bvecs = []

    def add_b(v):
        bvecs.append(v)
        return len(bvecs) - 1

    blk_cfgs = []
    for blk in blocks:
        d = int(blk["d"])
        w1, w2 = blk["w1"], blk["w2"]
        c_in, c_out = int(w1.shape[1]), int(w1.shape[2])
        # Statically drop taps whose window lies entirely in the zero pad.
        active = [k for k in range(K) if (K - 1 - k) * d < T]
        shifts = tuple((K - 1 - k) * d for k in active)
        w1cat = jnp.concatenate([w1[k] for k in active], axis=0)   # [n*c_in, c_out]
        has_res = "wres" in blk
        if has_res:
            # Residual 1x1 conv rides on the shift-0 (last) tap rows, zeros elsewhere.
            rescol = jnp.concatenate(
                [jnp.zeros(((len(active) - 1) * c_in, c_out), jnp.float32),
                 blk["wres"]], axis=0)
            w1cat = jnp.concatenate([w1cat, rescol], axis=1)       # [n*c_in, 2*c_out]
            b1 = jnp.concatenate([blk["b1"][0], blk["bres"][0]])
        else:
            b1 = blk["b1"][0]
        w2cat = jnp.concatenate([w2[k] for k in active], axis=0)   # [n*c_out, c_out]
        blk_cfgs.append(dict(
            c_in=c_in, c_out=c_out, has_res=has_res, shifts=shifts,
            w1_off=add_w(w1cat), w1_rows=int(w1cat.shape[0]), w1_cols=int(w1cat.shape[1]),
            w2_off=add_w(w2cat), w2_rows=int(w2cat.shape[0]),
            b1_row=add_b(b1), b2_row=add_b(blk["b2"][0]),
        ))

    whead = jnp.concatenate([params["wl"], params["wa"]], axis=0)  # [hidden+act, hidden]
    head_cfg = dict(
        hidden=hidden, act_dim=act_dim,
        wh_off=add_w(whead),
        n1_off=add_w(params["w1"]), n2_off=add_w(params["w2"]), n3_off=add_w(params["w3"]),
        bh_row=add_b(params["bl"][0] + params["ba"][0]),
        bn1_row=add_b(params["b1"][0]), bn2_row=add_b(params["b2"][0]),
        bn3_row=add_b(params["b3"][0]),
    )

    # Assemble the two slabs.
    total_cols = col[0]
    wr = max(int(m.shape[0]) for m in mats)
    wr = -(-wr // 8) * 8
    wc = -(-total_cols // 128) * 128
    padded = [jnp.pad(m, ((0, wr - int(m.shape[0])), (0, 0))) for m in mats]
    if total_cols < wc:
        padded.append(jnp.zeros((wr, wc - total_cols), jnp.float32))
    wslab = jnp.concatenate(padded, axis=1).astype(jnp.float32)
    bslab = jnp.stack([jnp.pad(v.astype(jnp.float32), (0, 128 - int(v.shape[0])))
                       for v in bvecs], axis=0)

    max_d = max(int(b["d"]) for b in blocks)
    maxpad = (K - 1) * max_d
    c_max = max([int(blocks[0]["w1"].shape[1])]
                + [int(b["w2"].shape[2]) for b in blocks])
    return wslab, bslab, blk_cfgs, head_cfg, maxpad, c_max


def _num_batch_tiles(B):
    """v7x has 2 TensorCores/chip -> shard the batch across them; on the
    single-TC v5e/v6e a grid is just a serial loop, so keep one tile."""
    try:
        kind = jax.devices()[0].device_kind.lower()
    except Exception:
        return 1
    if "v7" in kind and B >= 2 and B % 2 == 0:
        return 2
    return 1


def critic_forward(params, obs, act, *, num_batch_tiles=None):
    """obs: [B, obs_dim, T] (PyTorch NCW), act: [B, act_dim] -> Q-values [B]."""
    B, obs_dim, T = obs.shape
    act_dim = act.shape[1]
    x = jnp.transpose(obs, (0, 2, 1)).astype(jnp.float32)     # NCW -> NTC
    # TODO(synk): folding this NCW->NTC transpose into the kernel's first
    # staging store is possible; left as one tiny XLA relayout op.
    act = act.astype(jnp.float32)

    wslab, bslab, blk_cfgs, head_cfg, maxpad, c_max = _pack_operands(params, T)
    Tp = T + maxpad

    nt = num_batch_tiles if num_batch_tiles is not None else _num_batch_tiles(B)
    if nt < 1 or B % nt != 0:
        nt = 1
    Bt = B // nt
    x4 = x.reshape(nt, Bt, T, obs_dim)
    act3 = act.reshape(nt, Bt, act_dim)

    kern = functools.partial(fused_critic_kernel, blk_cfgs=blk_cfgs,
                             head_cfg=head_cfg, T=T, maxpad=maxpad, c_max=c_max)
    out = pl.pallas_call(
        kern,
        grid=(nt,),
        in_specs=[
            pl.BlockSpec((None, Bt, T, obs_dim), lambda i: (i, 0, 0, 0)),
            pl.BlockSpec((None, Bt, act_dim), lambda i: (i, 0, 0)),
            pl.BlockSpec(wslab.shape, lambda i: (0, 0)),
            pl.BlockSpec(bslab.shape, lambda i: (0, 0)),
        ],
        out_specs=pl.BlockSpec((None, Bt, 128), lambda i: (i, 0, 0)),
        out_shape=jax.ShapeDtypeStruct((nt, Bt, 128), jnp.float32),
        scratch_shapes=[pltpu.VMEM((Bt, Tp, c_max), jnp.float32)],
        compiler_params=pltpu.CompilerParams(
            dimension_semantics=("parallel",)),
    )(x4, act3, wslab, bslab)
    q = out.reshape(B, 128)[:, 0]
    return jnp.squeeze(q)          # matches torch x.squeeze() (scalar if B==1)


# ----------------------------------------------------------------------------
# Parameter init (deterministic, synthetic; torch-style uniform(-1/sqrt(fan_in)))
# Linear weights stored transposed ([in, out]); conv weights [K, C_in, C_out].
# Blocks with c_in == c_out have an identity residual (no wres/bres stored).
# ----------------------------------------------------------------------------
def init_params(key, obs_dim, act_dim, hidden_dim, channels=40, depth=3):
    def u(k, shape, fan_in):
        bound = 1.0 / math.sqrt(fan_in)
        return jax.random.uniform(k, shape, jnp.float32, -bound, bound)

    blocks = []
    c_in = obs_dim
    dil = 1
    for i in range(depth + 1):
        c_out = channels if i < depth else hidden_dim
        key, k1, k2, k3, k4, k5, k6 = jax.random.split(key, 7)
        blk = {
            "w1": u(k1, (K, c_in, c_out), c_in * K),
            "b1": u(k2, (1, c_out), c_in * K),
            "w2": u(k3, (K, c_out, c_out), c_out * K),
            "b2": u(k4, (1, c_out), c_out * K),
            "d": dil,
        }
        if c_in != c_out:                       # real 1x1-conv residual
            blk["wres"] = u(k5, (c_in, c_out), c_in)
            blk["bres"] = u(k6, (1, c_out), c_in)
        blocks.append(blk)
        c_in = c_out
        dil *= 2

    key, kl, kl2, ka, ka2, k1, k1b, k2, k2b, k3, k3b = jax.random.split(key, 11)
    return {
        "blocks": blocks,
        "wl": u(kl, (hidden_dim, hidden_dim), hidden_dim),
        "bl": u(kl2, (1, hidden_dim), hidden_dim),
        "wa": u(ka, (act_dim, hidden_dim), act_dim),
        "ba": u(ka2, (1, hidden_dim), act_dim),
        "w1": u(k1, (hidden_dim, hidden_dim), hidden_dim),
        "b1": u(k1b, (1, hidden_dim), hidden_dim),
        "w2": u(k2, (hidden_dim, hidden_dim), hidden_dim),
        "b2": u(k2b, (1, hidden_dim), hidden_dim),
        "w3": u(k3, (hidden_dim, 1), hidden_dim),
        "b3": u(k3b, (1, 1), hidden_dim),
    }


# ----------------------------------------------------------------------------
# Pure-JAX reference (same math) for a correctness check.
# ----------------------------------------------------------------------------
def _causal_conv_ref(x, w, b, d):
    B, T, c_in = x.shape
    pad = (K - 1) * d
    xpad = jnp.concatenate([jnp.zeros((B, pad, c_in), x.dtype), x], axis=1)
    acc = jnp.zeros((B, T, w.shape[2]), jnp.float32) + b[None]
    for k in range(K):
        acc = acc + jnp.einsum("btc,cd->btd", xpad[:, k * d:k * d + T, :], w[k])
    return acc


def ref_forward(params, obs, act):
    x = jnp.transpose(obs, (0, 2, 1)).astype(jnp.float32)
    for blk in params["blocks"]:
        h = _leaky(_causal_conv_ref(x, blk["w1"], blk["b1"], blk["d"]))
        h = _leaky(_causal_conv_ref(h, blk["w2"], blk["b2"], blk["d"]))
        if "wres" in blk:
            res = jnp.einsum("btc,cd->btd", x, blk["wres"]) + blk["bres"][None]
        else:
            res = x
        x = h + res
    pooled = jnp.max(x, axis=1)
    enc = pooled @ params["wl"] + params["bl"]
    a = act @ params["wa"] + params["ba"]
    y = jnp.maximum(enc + a, 0.0)
    y = jnp.maximum(y @ params["w1"] + params["b1"], 0.0)
    y = jnp.maximum(y @ params["w2"] + params["b2"], 0.0)
    y = y @ params["w3"] + params["b3"]
    return jnp.squeeze(y)


if __name__ == "__main__":
    B, obs_dim, T, act_dim, hidden_dim = 2, 4, 16, 4, 32
    key = jax.random.PRNGKey(0)
    kp, ko, ka = jax.random.split(key, 3)
    params = init_params(kp, obs_dim, act_dim, hidden_dim)
    obs = jax.random.normal(ko, (B, obs_dim, T), jnp.float32)   # NCW, like torch Conv1d
    act = jax.random.normal(ka, (B, act_dim), jnp.float32)

    out = critic_forward(params, obs, act)
    out = jax.block_until_ready(out)

    ref = ref_forward(params, obs, act)
    assert out.shape == (B,)
    assert jnp.allclose(out, ref, atol=1e-4, rtol=1e-4), (out, ref)
    print("KERNEL_OK")
</pallas_src>

<mosaic_0001>
module attributes {stable_mosaic.version = 11 : i64} {
  func.func @fused_critic_kernel(%arg0: i32, %arg1: memref<1x2x16x4xf32, #tpu.memory_space<vmem>>, %arg2: memref<1x2x4xf32, #tpu.memory_space<vmem>>, %arg3: memref<120x512xf32, #tpu.memory_space<vmem>>, %arg4: memref<12x128xf32, #tpu.memory_space<vmem>>, %arg5: memref<1x2x128xf32, #tpu.memory_space<vmem>>, %arg6: memref<2x32x40xf32, #tpu.memory_space<vmem>>) attributes {dimension_semantics = [#tpu.dimension_semantics<parallel>], iteration_bounds = array<i64: 1>, scalar_prefetch = 0 : i64, scratch_operands = 1 : i64, tpu.core_type = #tpu.core_type<tc>, window_params = [{transform_indices = @transform_0, window_bounds = array<i64: 1, 2, 16, 4>}, {transform_indices = @transform_1, window_bounds = array<i64: 1, 2, 4>}, {pipeline_mode = #tpu.pipeline_mode<synchronous>, transform_indices = @transform_2, window_bounds = array<i64: 120, 512>}, {pipeline_mode = #tpu.pipeline_mode<synchronous>, transform_indices = @transform_3, window_bounds = array<i64: 12, 128>}, {transform_indices = @transform_4, window_bounds = array<i64: 1, 2, 128>}]} {
    %cst = arith.constant 0.000000e+00 : f32
    %0 = vector.broadcast %cst : f32 to vector<2x16x40xf32>
    %c0 = arith.constant 0 : index
    %c0_0 = arith.constant 0 : index
    %c0_1 = arith.constant 0 : index
    %1 = vector.load %arg6[%c0, %c0_0, %c0_1] : memref<2x32x40xf32, #tpu.memory_space<vmem>>, vector<2x16x40xf32>
    tpu.vector_store %arg6[%c0, %c0_0, %c0_1], %0 {strides = array<i32>} : memref<2x32x40xf32, #tpu.memory_space<vmem>>, vector<2x16x40xf32>,
    %c0_2 = arith.constant 0 : index
    %c0_3 = arith.constant 0 : index
    %c0_4 = arith.constant 0 : index
    %c0_5 = arith.constant 0 : index
    %2 = vector.load %arg1[%c0_2, %c0_3, %c0_4, %c0_5] : memref<1x2x16x4xf32, #tpu.memory_space<vmem>>, vector<1x2x16x4xf32>
    %3 = vector.shape_cast %2 : vector<1x2x16x4xf32> to vector<2x16x4xf32>
    %c0_6 = arith.constant 0 : index
    %c16 = arith.constant 16 : index
    %c0_7 = arith.constant 0 : index
    %4 = vector.load %arg6[%c0_6, %c16, %c0_7] : memref<2x32x40xf32, #tpu.memory_space<vmem>>, vector<2x16x4xf32>
    tpu.vector_store %arg6[%c0_6, %c16, %c0_7], %3 {strides = array<i32>} : memref<2x32x40xf32, #tpu.memory_space<vmem>>, vector<2x16x4xf32>,
    %c0_8 = arith.constant 0 : index
    %c14 = arith.constant 14 : index
    %c0_9 = arith.constant 0 : index
    %5 = vector.load %arg6[%c0_8, %c14, %c0_9] : memref<2x32x40xf32, #tpu.memory_space<vmem>>, vector<2x16x4xf32>
    %c0_10 = arith.constant 0 : index
    %c15 = arith.constant 15 : index
    %c0_11 = arith.constant 0 : index
    %6 = vector.load %arg6[%c0_10, %c15, %c0_11] : memref<2x32x40xf32, #tpu.memory_space<vmem>>, vector<2x16x4xf32>
    %c0_12 = arith.constant 0 : index
    %c16_13 = arith.constant 16 : index
    %c0_14 = arith.constant 0 : index
    %7 = vector.load %arg6[%c0_12, %c16_13, %c0_14] : memref<2x32x40xf32, #tpu.memory_space<vmem>>, vector<2x16x4xf32>
    %8 = tpu.concatenate %5, %6, %7 in 2 : vector<2x16x4xf32>, vector<2x16x4xf32>, vector<2x16x4xf32> -> vector<2x16x12xf32>
    %9 = vector.shape_cast %8 : vector<2x16x12xf32> to vector<32x12xf32>
    %c0_15 = arith.constant 0 : index
    %c0_16 = arith.constant 0 : index
    %10 = vector.load %arg3[%c0_15, %c0_16] : memref<120x512xf32, #tpu.memory_space<vmem>>, vector<12x80xf32>
    %cst_17 = arith.constant dense<0.000000e+00> : vector<32x80xf32>
    %11 = tpu.matmul %9, %10, %cst_17 {dimension_numbers = #tpu.dot_dimension_numbers<[1], [0], [0], [1], [0, 0, 1, 1], [], []>} : vector<32x12xf32>, vector<12x80xf32>, vector<32x80xf32> -> vector<32x80xf32>
    %c0_18 = arith.constant 0 : index
    %c0_19 = arith.constant 0 : index
    %12 = vector.load %arg4[%c0_18, %c0_19] : memref<12x128xf32, #tpu.memory_space<vmem>>, vector<1x80xf32>
    %13 = vector.broadcast %12 : vector<1x80xf32> to vector<32x80xf32>
    %14 = arith.addf %11, %13 : vector<32x80xf32>
    %15 = vector.extract_strided_slice %14 {offsets = [0, 0], sizes = [32, 40], strides = [1, 1]} : vector<32x80xf32> to vector<32x40xf32>
    %cst_20 = arith.constant 0.000000e+00 : f32
    %16 = vector.broadcast %cst_20 : f32 to vector<32x40xf32>
    %17 = arith.cmpf ogt, %15, %16 : vector<32x40xf32>
    %cst_21 = arith.constant 0.00999999977 : f32
    %18 = vector.broadcast %cst_21 : f32 to vector<32x40xf32>
    %19 = arith.mulf %18, %15 : vector<32x40xf32>
    %20 = arith.select %17, %15, %19 : vector<32x40xi1>, vector<32x40xf32>
    %21 = vector.extract_strided_slice %14 {offsets = [0, 40], sizes = [32, 40], strides = [1, 1]} : vector<32x80xf32> to vector<32x40xf32>
    %22 = vector.shape_cast %20 : vector<32x40xf32> to vector<2x16x40xf32>
    %c0_22 = arith.constant 0 : index
    %c16_23 = arith.constant 16 : index
    %c0_24 = arith.constant 0 : index
    %23 = vector.load %arg6[%c0_22, %c16_23, %c0_24] : memref<2x32x40xf32, #tpu.memory_space<vmem>>, vector<2x16x40xf32>
    tpu.vector_store %arg6[%c0_22, %c16_23, %c0_24], %22 {strides = array<i32>} : memref<2x32x40xf32, #tpu.memory_space<vmem>>, vector<2x16x40xf32>,
    %c0_25 = arith.constant 0 : index
    %c14_26 = arith.constant 14 : index
    %c0_27 = arith.constant 0 : index
    %24 = vector.load %arg6[%c0_25, %c14_26, %c0_27] : memref<2x32x40xf32, #tpu.memory_space<vmem>>, vector<2x16x40xf32>
    %c0_28 = arith.constant 0 : index
    %c15_29 = arith.constant 15 : index
    %c0_30 = arith.constant 0 : index
    %25 = vector.load %arg6[%c0_28, %c15_29, %c0_30] : memref<2x32x40xf32, #tpu.memory_space<vmem>>, vector<2x16x40xf32>
    %c0_31 = arith.constant 0 : index
    %c16_32 = arith.constant 16 : index
    %c0_33 = arith.constant 0 : index
    %26 = vector.load %arg6[%c0_31, %c16_32, %c0_33] : memref<2x32x40xf32, #tpu.memory_space<vmem>>, vector<2x16x40xf32>
    %27 = tpu.concatenate %24, %25, %26 in 2 : vector<2x16x40xf32>, vector<2x16x40xf32>, vector<2x16x40xf32> -> vector<2x16x120xf32>
    %28 = vector.shape_cast %27 : vector<2x16x120xf32> to vector<32x120xf32>
    %c0_34 = arith.constant 0 : index
    %c80 = arith.constant 80 : index
    %29 = vector.load %arg3[%c0_34, %c80] : memref<120x512xf32, #tpu.memory_space<vmem>>, vector<120x40xf32>
    %cst_35 = arith.constant dense<0.000000e+00> : vector<32x40xf32>
    %30 = tpu.matmul %28, %29, %cst_35 {dimension_numbers = #tpu.dot_dimension_numbers<[1], [0], [0], [1], [0, 0, 1, 1], [], []>} : vector<32x120xf32>, vector<120x40xf32>, vector<32x40xf32> -> vector<32x40xf32>
    %c1 = arith.constant 1 : index
    %c0_36 = arith.constant 0 : index
    %31 = vector.load %arg4[%c1, %c0_36] : memref<12x128xf32, #tpu.memory_space<vmem>>, vector<1x40xf32>
    %32 = vector.broadcast %31 : vector<1x40xf32> to vector<32x40xf32>
    %33 = arith.addf %30, %32 : vector<32x40xf32>
    %cst_37 = arith.constant 0.000000e+00 : f32
    %34 = vector.broadcast %cst_37 : f32 to vector<32x40xf32>
    %35 = arith.cmpf ogt, %33, %34 : vector<32x40xf32>
    %cst_38 = arith.constant 0.00999999977 : f32
    %36 = vector.broadcast %cst_38 : f32 to vector<32x40xf32>
    %37 = arith.mulf %36, %33 : vector<32x40xf32>
    %38 = arith.select %35, %33, %37 : vector<32x40xi1>, vector<32x40xf32>
    %39 = arith.addf %38, %21 : vector<32x40xf32>
    %40 = vector.shape_cast %39 : vector<32x40xf32> to vector<2x16x40xf32>
    %c0_39 = arith.constant 0 : index
    %c16_40 = arith.constant 16 : index
    %c0_41 = arith.constant 0 : index
    %41 = vector.load %arg6[%c0_39, %c16_40, %c0_41] : memref<2x32x40xf32, #tpu.memory_space<vmem>>, vector<2x16x40xf32>
    tpu.vector_store %arg6[%c0_39, %c16_40, %c0_41], %40 {strides = array<i32>} : memref<2x32x40xf32, #tpu.memory_space<vmem>>, vector<2x16x40xf32>,
    %c0_42 = arith.constant 0 : index
    %c12 = arith.constant 12 : index
    %c0_43 = arith.constant 0 : index
    %42 = vector.load %arg6[%c0_42, %c12, %c0_43] : memref<2x32x40xf32, #tpu.memory_space<vmem>>, vector<2x16x40xf32>
    %c0_44 = arith.constant 0 : index
    %c14_45 = arith.constant 14 : index
    %c0_46 = arith.constant 0 : index
    %43 = vector.load %arg6[%c0_44, %c14_45, %c0_46] : memref<2x32x40xf32, #tpu.memory_space<vmem>>, vector<2x16x40xf32>
    %c0_47 = arith.constant 0 : index
    %c16_48 = arith.constant 16 : index
    %c0_49 = arith.constant 0 : index
    %44 = vector.load %arg6[%c0_47, %c16_48, %c0_49] : memref<2x32x40xf32, #tpu.memory_space<vmem>>, vector<2x16x40xf32>
    %45 = tpu.concatenate %42, %43, %44 in 2 : vector<2x16x40xf32>, vector<2x16x40xf32>, vector<2x16x40xf32> -> vector<2x16x120xf32>
    %46 = vector.shape_cast %45 : vector<2x16x120xf32> to vector<32x120xf32>
    %c0_50 = arith.constant 0 : index
    %c120 = arith.constant 120 : index
    %47 = vector.load %arg3[%c0_50, %c120] : memref<120x512xf32, #tpu.memory_space<vmem>>, vector<120x40xf32>
    %cst_51 = arith.constant dense<0.000000e+00> : vector<32x40xf32>
    %48 = tpu.matmul %46, %47, %cst_51 {dimension_numbers = #tpu.dot_dimension_numbers<[1], [0], [0], [1], [0, 0, 1, 1], [], []>} : vector<32x120xf32>, vector<120x40xf32>, vector<32x40xf32> -> vector<32x40xf32>
    %c2 = arith.constant 2 : index
    %c0_52 = arith.constant 0 : index
    %49 = vector.load %arg4[%c2, %c0_52] : memref<12x128xf32, #tpu.memory_space<vmem>>, vector<1x40xf32>
    %50 = vector.broadcast %49 : vector<1x40xf32> to vector<32x40xf32>
    %51 = arith.addf %48, %50 : vector<32x40xf32>
    %cst_53 = arith.constant 0.000000e+00 : f32
    %52 = vector.broadcast %cst_53 : f32 to vector<32x40xf32>
    %53 = arith.cmpf ogt, %51, %52 : vector<32x40xf32>
    %cst_54 = arith.constant 0.00999999977 : f32
    %54 = vector.broadcast %cst_54 : f32 to vector<32x40xf32>
    %55 = arith.mulf %54, %51 : vector<32x40xf32>
    %56 = arith.select %53, %51, %55 : vector<32x40xi1>, vector<32x40xf32>
    %57 = vector.shape_cast %44 : vector<2x16x40xf32> to vector<32x40xf32>
    %58 = vector.shape_cast %56 : vector<32x40xf32> to vector<2x16x40xf32>
    %c0_55 = arith.constant 0 : index
    %c16_56 = arith.constant 16 : index
    %c0_57 = arith.constant 0 : index
    %59 = vector.load %arg6[%c0_55, %c16_56, %c0_57] : memref<2x32x40xf32, #tpu.memory_space<vmem>>, vector<2x16x40xf32>
    tpu.vector_store %arg6[%c0_55, %c16_56, %c0_57], %58 {strides = array<i32>} : memref<2x32x40xf32, #tpu.memory_space<vmem>>, vector<2x16x40xf32>,
    %c0_58 = arith.constant 0 : index
    %c12_59 = arith.constant 12 : index
    %c0_60 = arith.constant 0 : index
    %60 = vector.load %arg6[%c0_58, %c12_59, %c0_60] : memref<2x32x40xf32, #tpu.memory_space<vmem>>, vector<2x16x40xf32>
    %c0_61 = arith.constant 0 : index
    %c14_62 = arith.constant 14 : index
    %c0_63 = arith.constant 0 : index
    %61 = vector.load %arg6[%c0_61, %c14_62, %c0_63] : memref<2x32x40xf32, #tpu.memory_space<vmem>>, vector<2x16x40xf32>
    %c0_64 = arith.constant 0 : index
    %c16_65 = arith.constant 16 : index
    %c0_66 = arith.constant 0 : index
    %62 = vector.load %arg6[%c0_64, %c16_65, %c0_66] : memref<2x32x40xf32, #tpu.memory_space<vmem>>, vector<2x16x40xf32>
    %63 = tpu.concatenate %60, %61, %62 in 2 : vector<2x16x40xf32>, vector<2x16x40xf32>, vector<2x16x40xf32> -> vector<2x16x120xf32>
    %64 = vector.shape_cast %63 : vector<2x16x120xf32> to vector<32x120xf32>
    %c0_67 = arith.constant 0 : index
    %c160 = arith.constant 160 : index
    %65 = vector.load %arg3[%c0_67, %c160] : memref<120x512xf32, #tpu.memory_space<vmem>>, vector<120x40xf32>
    %cst_68 = arith.constant dense<0.000000e+00> : vector<32x40xf32>
    %66 = tpu.matmul %64, %65, %cst_68 {dimension_numbers = #tpu.dot_dimension_numbers<[1], [0], [0], [1], [0, 0, 1, 1], [], []>} : vector<32x120xf32>, vector<120x40xf32>, vector<32x40xf32> -> vector<32x40xf32>
    %c3 = arith.constant 3 : index
    %c0_69 = arith.constant 0 : index
    %67 = vector.load %arg4[%c3, %c0_69] : memref<12x128xf32, #tpu.memory_space<vmem>>, vector<1x40xf32>
    %68 = vector.broadcast %67 : vector<1x40xf32> to vector<32x40xf32>
    %69 = arith.addf %66, %68 : vector<32x40xf32>
    %cst_70 = arith.constant 0.000000e+00 : f32
    %70 = vector.broadcast %cst_70 : f32 to vector<32x40xf32>
    %71 = arith.cmpf ogt, %69, %70 : vector<32x40xf32>
    %cst_71 = arith.constant 0.00999999977 : f32
    %72 = vector.broadcast %cst_71 : f32 to vector<32x40xf32>
    %73 = arith.mulf %72, %69 : vector<32x40xf32>
    %74 = arith.select %71, %69, %73 : vector<32x40xi1>, vector<32x40xf32>
    %75 = arith.addf %74, %57 : vector<32x40xf32>
    %76 = vector.shape_cast %75 : vector<32x40xf32> to vector<2x16x40xf32>
    %c0_72 = arith.constant 0 : index
    %c16_73 = arith.constant 16 : index
    %c0_74 = arith.constant 0 : index
    %77 = vector.load %arg6[%c0_72, %c16_73, %c0_74] : memref<2x32x40xf32, #tpu.memory_space<vmem>>, vector<2x16x40xf32>
    tpu.vector_store %arg6[%c0_72, %c16_73, %c0_74], %76 {strides = array<i32>} : memref<2x32x40xf32, #tpu.memory_space<vmem>>, vector<2x16x40xf32>,
    %c0_75 = arith.constant 0 : index
    %c8 = arith.constant 8 : index
    %c0_76 = arith.constant 0 : index
    %78 = vector.load %arg6[%c0_75, %c8, %c0_76] : memref<2x32x40xf32, #tpu.memory_space<vmem>>, vector<2x16x40xf32>
    %c0_77 = arith.constant 0 : index
    %c12_78 = arith.constant 12 : index
    %c0_79 = arith.constant 0 : index
    %79 = vector.load %arg6[%c0_77, %c12_78, %c0_79] : memref<2x32x40xf32, #tpu.memory_space<vmem>>, vector<2x16x40xf32>
    %c0_80 = arith.constant 0 : index
    %c16_81 = arith.constant 16 : index
    %c0_82 = arith.constant 0 : index
    %80 = vector.load %arg6[%c0_80, %c16_81, %c0_82] : memref<2x32x40xf32, #tpu.memory_space<vmem>>, vector<2x16x40xf32>
    %81 = tpu.concatenate %78, %79, %80 in 2 : vector<2x16x40xf32>, vector<2x16x40xf32>, vector<2x16x40xf32> -> vector<2x16x120xf32>
    %82 = vector.shape_cast %81 : vector<2x16x120xf32> to vector<32x120xf32>
    %c0_83 = arith.constant 0 : index
    %c200 = arith.constant 200 : index
    %83 = vector.load %arg3[%c0_83, %c200] : memref<120x512xf32, #tpu.memory_space<vmem>>, vector<120x40xf32>
    %cst_84 = arith.constant dense<0.000000e+00> : vector<32x40xf32>
    %84 = tpu.matmul %82, %83, %cst_84 {dimension_numbers = #tpu.dot_dimension_numbers<[1], [0], [0], [1], [0, 0, 1, 1], [], []>} : vector<32x120xf32>, vector<120x40xf32>, vector<32x40xf32> -> vector<32x40xf32>
    %c4 = arith.constant 4 : index
    %c0_85 = arith.constant 0 : index
    %85 = vector.load %arg4[%c4, %c0_85] : memref<12x128xf32, #tpu.memory_space<vmem>>, vector<1x40xf32>
    %86 = vector.broadcast %85 : vector<1x40xf32> to vector<32x40xf32>
    %87 = arith.addf %84, %86 : vector<32x40xf32>
    %cst_86 = arith.constant 0.000000e+00 : f32
    %88 = vector.broadcast %cst_86 : f32 to vector<32x40xf32>
    %89 = arith.cmpf ogt, %87, %88 : vector<32x40xf32>
    %cst_87 = arith.constant 0.00999999977 : f32
    %90 = vector.broadcast %cst_87 : f32 to vector<32x40xf32>
    %91 = arith.mulf %90, %87 : vector<32x40xf32>
    %92 = arith.select %89, %87, %91 : vector<32x40xi1>, vector<32x40xf32>
    %93 = vector.shape_cast %80 : vector<2x16x40xf32> to vector<32x40xf32>
    %94 = vector.shape_cast %92 : vector<32x40xf32> to vector<2x16x40xf32>
    %c0_88 = arith.constant 0 : index
    %c16_89 = arith.constant 16 : index
    %c0_90 = arith.constant 0 : index
    %95 = vector.load %arg6[%c0_88, %c16_89, %c0_90] : memref<2x32x40xf32, #tpu.memory_space<vmem>>, vector<2x16x40xf32>
    tpu.vector_store %arg6[%c0_88, %c16_89, %c0_90], %94 {strides = array<i32>} : memref<2x32x40xf32, #tpu.memory_space<vmem>>, vector<2x16x40xf32>,
    %c0_91 = arith.constant 0 : index
    %c8_92 = arith.constant 8 : index
    %c0_93 = arith.constant 0 : index
    %96 = vector.load %arg6[%c0_91, %c8_92, %c0_93] : memref<2x32x40xf32, #tpu.memory_space<vmem>>, vector<2x16x40xf32>
    %c0_94 = arith.constant 0 : index
    %c12_95 = arith.constant 12 : index
    %c0_96 = arith.constant 0 : index
    %97 = vector.load %arg6[%c0_94, %c12_95, %c0_96] : memref<2x32x40xf32, #tpu.memory_space<vmem>>, vector<2x16x40xf32>
    %c0_97 = arith.constant 0 : index
    %c16_98 = arith.constant 16 : index
    %c0_99 = arith.constant 0 : index
    %98 = vector.load %arg6[%c0_97, %c16_98, %c0_99] : memref<2x32x40xf32, #tpu.memory_space<vmem>>, vector<2x16x40xf32>
    %99 = tpu.concatenate %96, %97, %98 in 2 : vector<2x16x40xf32>, vector<2x16x40xf32>, vector<2x16x40xf32> -> vector<2x16x120xf32>
    %100 = vector.shape_cast %99 : vector<2x16x120xf32> to vector<32x120xf32>
    %c0_100 = arith.constant 0 : index
    %c240 = arith.constant 240 : index
    %101 = vector.load %arg3[%c0_100, %c240] : memref<120x512xf32, #tpu.memory_space<vmem>>, vector<120x40xf32>
    %cst_101 = arith.constant dense<0.000000e+00> : vector<32x40xf32>
    %102 = tpu.matmul %100, %101, %cst_101 {dimension_numbers = #tpu.dot_dimension_numbers<[1], [0], [0], [1], [0, 0, 1, 1], [], []>} : vector<32x120xf32>, vector<120x40xf32>, vector<32x40xf32> -> vector<32x40xf32>
    %c5 = arith.constant 5 : index
    %c0_102 = arith.constant 0 : index
    %103 = vector.load %arg4[%c5, %c0_102] : memref<12x128xf32, #tpu.memory_space<vmem>>, vector<1x40xf32>
    %104 = vector.broadcast %103 : vector<1x40xf32> to vector<32x40xf32>
    %105 = arith.addf %102, %104 : vector<32x40xf32>
    %cst_103 = arith.constant 0.000000e+00 : f32
    %106 = vector.broadcast %cst_103 : f32 to vector<32x40xf32>
    %107 = arith.cmpf ogt, %105, %106 : vector<32x40xf32>
    %cst_104 = arith.constant 0.00999999977 : f32
    %108 = vector.broadcast %cst_104 : f32 to vector<32x40xf32>
    %109 = arith.mulf %108, %105 : vector<32x40xf32>
    %110 = arith.select %107, %105, %109 : vector<32x40xi1>, vector<32x40xf32>
    %111 = arith.addf %110, %93 : vector<32x40xf32>
    %112 = vector.shape_cast %111 : vector<32x40xf32> to vector<2x16x40xf32>
    %c0_105 = arith.constant 0 : index
    %c16_106 = arith.constant 16 : index
    %c0_107 = arith.constant 0 : index
    %113 = vector.load %arg6[%c0_105, %c16_106, %c0_107] : memref<2x32x40xf32, #tpu.memory_space<vmem>>, vector<2x16x40xf32>
    tpu.vector_store %arg6[%c0_105, %c16_106, %c0_107], %112 {strides = array<i32>} : memref<2x32x40xf32, #tpu.memory_space<vmem>>, vector<2x16x40xf32>,
    %c0_108 = arith.constant 0 : index
    %c8_109 = arith.constant 8 : index
    %c0_110 = arith.constant 0 : index
    %114 = vector.load %arg6[%c0_108, %c8_109, %c0_110] : memref<2x32x40xf32, #tpu.memory_space<vmem>>, vector<2x16x40xf32>
    %c0_111 = arith.constant 0 : index
    %c16_112 = arith.constant 16 : index
    %c0_113 = arith.constant 0 : index
    %115 = vector.load %arg6[%c0_111, %c16_112, %c0_113] : memref<2x32x40xf32, #tpu.memory_space<vmem>>, vector<2x16x40xf32>
    %116 = tpu.concatenate %114, %115 in 2 : vector<2x16x40xf32>, vector<2x16x40xf32> -> vector<2x16x80xf32>
    %117 = vector.shape_cast %116 : vector<2x16x80xf32> to vector<32x80xf32>
    %c0_114 = arith.constant 0 : index
    %c280 = arith.constant 280 : index
    %118 = vector.load %arg3[%c0_114, %c280] : memref<120x512xf32, #tpu.memory_space<vmem>>, vector<80x64xf32>
    %cst_115 = arith.constant dense<0.000000e+00> : vector<32x64xf32>
    %119 = tpu.matmul %117, %118, %cst_115 {dimension_numbers = #tpu.dot_dimension_numbers<[1], [0], [0], [1], [0, 0, 1, 1], [], []>} : vector<32x80xf32>, vector<80x64xf32>, vector<32x64xf32> -> vector<32x64xf32>
    %c6 = arith.constant 6 : index
    %c0_116 = arith.constant 0 : index
    %120 = vector.load %arg4[%c6, %c0_116] : memref<12x128xf32, #tpu.memory_space<vmem>>, vector<1x64xf32>
    %121 = vector.broadcast %120 : vector<1x64xf32> to vector<32x64xf32>
    %122 = arith.addf %119, %121 : vector<32x64xf32>
    %123 = vector.extract_strided_slice %122 {offsets = [0, 0], sizes = [32, 32], strides = [1, 1]} : vector<32x64xf32> to vector<32x32xf32>
    %cst_117 = arith.constant 0.000000e+00 : f32
    %124 = vector.broadcast %cst_117 : f32 to vector<32x32xf32>
    %125 = arith.cmpf ogt, %123, %124 : vector<32x32xf32>
    %cst_118 = arith.constant 0.00999999977 : f32
    %126 = vector.broadcast %cst_118 : f32 to vector<32x32xf32>
    %127 = arith.mulf %126, %123 : vector<32x32xf32>
    %128 = arith.select %125, %123, %127 : vector<32x32xi1>, vector<32x32xf32>
    %129 = vector.extract_strided_slice %122 {offsets = [0, 32], sizes = [32, 32], strides = [1, 1]} : vector<32x64xf32> to vector<32x32xf32>
    %130 = vector.shape_cast %128 : vector<32x32xf32> to vector<2x16x32xf32>
    %c0_119 = arith.constant 0 : index
    %c16_120 = arith.constant 16 : index
    %c0_121 = arith.constant 0 : index
    %131 = vector.load %arg6[%c0_119, %c16_120, %c0_121] : memref<2x32x40xf32, #tpu.memory_space<vmem>>, vector<2x16x32xf32>
    tpu.vector_store %arg6[%c0_119, %c16_120, %c0_121], %130 {strides = array<i32>} : memref<2x32x40xf32, #tpu.memory_space<vmem>>, vector<2x16x32xf32>,
    %c0_122 = arith.constant 0 : index
    %c8_123 = arith.constant 8 : index
    %c0_124 = arith.constant 0 : index
    %132 = vector.load %arg6[%c0_122, %c8_123, %c0_124] : memref<2x32x40xf32, #tpu.memory_space<vmem>>, vector<2x16x32xf32>
    %c0_125 = arith.constant 0 : index
    %c16_126 = arith.constant 16 : index
    %c0_127 = arith.constant 0 : index
    %133 = vector.load %arg6[%c0_125, %c16_126, %c0_127] : memref<2x32x40xf32, #tpu.memory_space<vmem>>, vector<2x16x32xf32>
    %134 = tpu.concatenate %132, %133 in 2 : vector<2x16x32xf32>, vector<2x16x32xf32> -> vector<2x16x64xf32>
    %135 = vector.shape_cast %134 : vector<2x16x64xf32> to vector<32x64xf32>
    %c0_128 = arith.constant 0 : index
    %c344 = arith.constant 344 : index
    %136 = vector.load %arg3[%c0_128, %c344] : memref<120x512xf32, #tpu.memory_space<vmem>>, vector<64x32xf32>
    %cst_129 = arith.constant dense<0.000000e+00> : vector<32x32xf32>
    %137 = tpu.matmul %135, %136, %cst_129 {dimension_numbers = #tpu.dot_dimension_numbers<[1], [0], [0], [1], [0, 0, 1, 1], [], []>} : vector<32x64xf32>, vector<64x32xf32>, vector<32x32xf32> -> vector<32x32xf32>
    %c7 = arith.constant 7 : index
    %c0_130 = arith.constant 0 : index
    %138 = vector.load %arg4[%c7, %c0_130] : memref<12x128xf32, #tpu.memory_space<vmem>>, vector<1x32xf32>
    %139 = vector.broadcast %138 : vector<1x32xf32> to vector<32x32xf32>
    %140 = arith.addf %137, %139 : vector<32x32xf32>
    %cst_131 = arith.constant 0.000000e+00 : f32
    %141 = vector.broadcast %cst_131 : f32 to vector<32x32xf32>
    %142 = arith.cmpf ogt, %140, %141 : vector<32x32xf32>
    %cst_132 = arith.constant 0.00999999977 : f32
    %143 = vector.broadcast %cst_132 : f32 to vector<32x32xf32>
    %144 = arith.mulf %143, %140 : vector<32x32xf32>
    %145 = arith.select %142, %140, %144 : vector<32x32xi1>, vector<32x32xf32>
    %146 = arith.addf %145, %129 : vector<32x32xf32>
    %147 = vector.shape_cast %146 : vector<32x32xf32> to vector<2x16x32xf32>
    %cst_133 = arith.constant dense<0xFF800000> : vector<2x32xf32>
    %148 = vector.multi_reduction <maximumf>, %147, %cst_133 [1] : vector<2x16x32xf32> to vector<2x32xf32>
    %c0_134 = arith.constant 0 : index
    %c0_135 = arith.constant 0 : index
    %c0_136 = arith.constant 0 : index
    %149 = vector.load %arg2[%c0_134, %c0_135, %c0_136] : memref<1x2x4xf32, #tpu.memory_space<vmem>>, vector<1x2x4xf32>
    %150 = vector.shape_cast %149 : vector<1x2x4xf32> to vector<2x4xf32>
    %151 = tpu.concatenate %148, %150 in 1 : vector<2x32xf32>, vector<2x4xf32> -> vector<2x36xf32>
    %c0_137 = arith.constant 0 : index
    %c376 = arith.constant 376 : index
    %152 = vector.load %arg3[%c0_137, %c376] : memref<120x512xf32, #tpu.memory_space<vmem>>, vector<36x32xf32>
    %cst_138 = arith.constant dense<0.000000e+00> : vector<2x32xf32>
    %153 = tpu.matmul %151, %152, %cst_138 {dimension_numbers = #tpu.dot_dimension_numbers<[1], [0], [0], [1], [0, 0, 1, 1], [], []>} : vector<2x36xf32>, vector<36x32xf32>, vector<2x32xf32> -> vector<2x32xf32>
    %c8_139 = arith.constant 8 : index
    %c0_140 = arith.constant 0 : index
    %154 = vector.load %arg4[%c8_139, %c0_140] : memref<12x128xf32, #tpu.memory_space<vmem>>, vector<1x32xf32>
    %155 = vector.broadcast %154 : vector<1x32xf32> to vector<2x32xf32>
    %156 = arith.addf %153, %155 : vector<2x32xf32>
    %cst_141 = arith.constant 0.000000e+00 : f32
    %157 = vector.broadcast %cst_141 : f32 to vector<2x32xf32>
    %158 = arith.maximumf %156, %157 : vector<2x32xf32>
    %c0_142 = arith.constant 0 : index
    %c408 = arith.constant 408 : index
    %159 = vector.load %arg3[%c0_142, %c408] : memref<120x512xf32, #tpu.memory_space<vmem>>, vector<32x32xf32>
    %cst_143 = arith.constant dense<0.000000e+00> : vector<2x32xf32>
    %160 = tpu.matmul %158, %159, %cst_143 {dimension_numbers = #tpu.dot_dimension_numbers<[1], [0], [0], [1], [0, 0, 1, 1], [], []>} : vector<2x32xf32>, vector<32x32xf32>, vector<2x32xf32> -> vector<2x32xf32>
    %c9 = arith.constant 9 : index
    %c0_144 = arith.constant 0 : index
    %161 = vector.load %arg4[%c9, %c0_144] : memref<12x128xf32, #tpu.memory_space<vmem>>, vector<1x32xf32>
    %162 = vector.broadcast %161 : vector<1x32xf32> to vector<2x32xf32>
    %163 = arith.addf %160, %162 : vector<2x32xf32>
    %cst_145 = arith.constant 0.000000e+00 : f32
    %164 = vector.broadcast %cst_145 : f32 to vector<2x32xf32>
    %165 = arith.maximumf %163, %164 : vector<2x32xf32>
    %c0_146 = arith.constant 0 : index
    %c440 = arith.constant 440 : index
    %166 = vector.load %arg3[%c0_146, %c440] : memref<120x512xf32, #tpu.memory_space<vmem>>, vector<32x32xf32>
    %cst_147 = arith.constant dense<0.000000e+00> : vector<2x32xf32>
    %167 = tpu.matmul %165, %166, %cst_147 {dimension_numbers = #tpu.dot_dimension_numbers<[1], [0], [0], [1], [0, 0, 1, 1], [], []>} : vector<2x32xf32>, vector<32x32xf32>, vector<2x32xf32> -> vector<2x32xf32>
    %c10 = arith.constant 10 : index
    %c0_148 = arith.constant 0 : index
    %168 = vector.load %arg4[%c10, %c0_148] : memref<12x128xf32, #tpu.memory_space<vmem>>, vector<1x32xf32>
    %169 = vector.broadcast %168 : vector<1x32xf32> to vector<2x32xf32>
    %170 = arith.addf %167, %169 : vector<2x32xf32>
    %cst_149 = arith.constant 0.000000e+00 : f32
    %171 = vector.broadcast %cst_149 : f32 to vector<2x32xf32>
    %172 = arith.maximumf %170, %171 : vector<2x32xf32>
    %c0_150 = arith.constant 0 : index
    %c472 = arith.constant 472 : index
    %173 = vector.load %arg3[%c0_150, %c472] : memref<120x512xf32, #tpu.memory_space<vmem>>, vector<32x1xf32>
    %cst_151 = arith.constant dense<0.000000e+00> : vector<2x1xf32>
    %174 = tpu.matmul %172, %173, %cst_151 {dimension_numbers = #tpu.dot_dimension_numbers<[1], [0], [0], [1], [0, 0, 1, 1], [], []>} : vector<2x32xf32>, vector<32x1xf32>, vector<2x1xf32> -> vector<2x1xf32>
    %c11 = arith.constant 11 : index
    %c0_152 = arith.constant 0 : index
    %175 = vector.load %arg4[%c11, %c0_152] : memref<12x128xf32, #tpu.memory_space<vmem>>, vector<1x1xf32>
    %176 = vector.broadcast %175 : vector<1x1xf32> to vector<2x1xf32>
    %177 = arith.addf %174, %176 : vector<2x1xf32>
    %178 = vector.shape_cast %177 : vector<2x1xf32> to vector<2x1xf32>
    %179 = vector.broadcast %178 : vector<2x1xf32> to vector<2x128xf32>
    %c0_153 = arith.constant 0 : index
    %c0_154 = arith.constant 0 : index
    %c0_155 = arith.constant 0 : index
    %180 = vector.load %arg5[%c0_153, %c0_154, %c0_155] : memref<1x2x128xf32, #tpu.memory_space<vmem>>, vector<1x2x128xf32>
    %181 = vector.shape_cast %180 : vector<1x2x128xf32> to vector<2x128xf32>
    %182 = vector.shape_cast %179 : vector<2x128xf32> to vector<1x2x128xf32>
    tpu.vector_store %arg5[%c0_153, %c0_154, %c0_155], %182 {strides = array<i32>} : memref<1x2x128xf32, #tpu.memory_space<vmem>>, vector<1x2x128xf32>,
    return
  }
  func.func @transform_0(%arg0: i32) -> (i32, i32, i32, i32) {
    %c0_i32 = arith.constant 0 : i32
    %c0_i32_0 = arith.constant 0 : i32
    %c0_i32_1 = arith.constant 0 : i32
    %c0_i32_2 = arith.constant 0 : i32
    return %arg0, %c0_i32, %c0_i32_0, %c0_i32_1 : i32, i32, i32, i32
  }
  func.func @transform_1(%arg0: i32) -> (i32, i32, i32) {
    %c0_i32 = arith.constant 0 : i32
    %c0_i32_0 = arith.constant 0 : i32
    %c0_i32_1 = arith.constant 0 : i32
    return %arg0, %c0_i32, %c0_i32_0 : i32, i32, i32
  }
  func.func @transform_2(%arg0: i32) -> (i32, i32) {
    %c0_i32 = arith.constant 0 : i32
    %c0_i32_0 = arith.constant 0 : i32
    %c0_i32_1 = arith.constant 0 : i32
    return %c0_i32, %c0_i32_0 : i32, i32
  }
  func.func @transform_3(%arg0: i32) -> (i32, i32) {
    %c0_i32 = arith.constant 0 : i32
    %c0_i32_0 = arith.constant 0 : i32
    %c0_i32_1 = arith.constant 0 : i32
    return %c0_i32, %c0_i32_0 : i32, i32
  }
  func.func @transform_4(%arg0: i32) -> (i32, i32, i32) {
    %c0_i32 = arith.constant 0 : i32
    %c0_i32_0 = arith.constant 0 : i32
    %c0_i32_1 = arith.constant 0 : i32
    return %arg0, %c0_i32, %c0_i32_0 : i32, i32, i32
  }
}

</mosaic_0001>

<llo_original>
// kernel: tpu_custom_call.1
$region0: #{tpu_custom_call.1}
  #allocation0 [shape = 'u32[]', space=smem, size = 0x4, offset = 0x4, fixed_abs, tag = 'smem constant byte address 0x4 - core index']
  #allocation1 [shape = 'u32[72,128]{1,0:T(1,128)}', space=vmem, size = 0x9000, scoped, tag = 'internal scratch']
  #allocation2 [shape = 'f32[2,32,40]{2,1,0:T(8,128)}', space=vmem, size = 0x8000, scoped, tag = 'scratch operand']
  %s0 = inlined_call_operand.vmem [shape: f32[1,2,16,4], index: 0, kind: input, shape index: {}]
  %s1 = inlined_call_operand.vmem [shape: f32[1,2,4], index: 1, kind: input, shape index: {}]
  %s2 = inlined_call_operand.hbm [shape: f32[120,512], index: 2, kind: input, shape index: {}]
  %s3 = inlined_call_operand.vmem [shape: f32[12,128], index: 3, kind: input, shape index: {}]
  %s4 = inlined_call_operand.hbm [shape: f32[1,2,128], index: 4, kind: output, shape index: {}]
  %s5 = sld [smem:[#allocation0]]
  $region30: #{tpu_custom_call.1} parent=0
    _
  %s7 = ssub.s32 1, %s5
  %s8 = scalar_select 0, %s7, %s5
  $region1: #{tpu_custom_call.1} parent=0
    #allocation3 [shape = 'u8[245760]{0}', space=vmem, size = 0x3c000, scoped, tag = 'input window, operand 2, single buffered']
    #allocation4 [shape = 's32[1]{0}', space=sflag, size = 0x4, scoped, tag = 'scoped memory for tpu_custom_call.1']
    #allocation5 [shape = 's32[1]{0}', space=sflag, size = 0x4, scoped, tag = 'scoped memory for tpu_custom_call.1']
    #allocation6 [shape = 'u8[1024]{0}', space=vmem, size = 0x400, scoped, tag = 'output window, operand 0, single buffered']
    %9 = vsyncpa [#allocation4], 0
    %10 = vsyncpa [#allocation5], 0
    // Predicated region
    $region2: #{tpu_custom_call.1} parent=1 // pred_check
      _
    $region3: #{tpu_custom_call.1} parent=1 // pred_check_branch
      %12 = sbr.rel (0) target = $region5
    $region4: #{tpu_custom_call.1} parent=1 // pred_region
      _
    $region5: #{tpu_custom_call.1} parent=1 // pred_fallthru
      _
    // Predicated region
    $region6: #{tpu_custom_call.1} parent=1 // pred_check
      _
    $region7: #{tpu_custom_call.1} parent=1 // pred_check_branch
      %14 = sbr.rel (0) target = $region9
    $region8: #{tpu_custom_call.1} parent=1 // pred_region
      _
    $region9: #{tpu_custom_call.1} parent=1 // pred_fallthru
      _
    // Predicated region
    $region10: #{tpu_custom_call.1} parent=1 // pred_check
      _
    $region11: #{tpu_custom_call.1} parent=1 // pred_check_branch
      %16 = sbr.rel (0) target = $region13
    $region12: #{tpu_custom_call.1} parent=1 // pred_region
      %18 = vsyncadd [#allocation4], 0
      %s19 = sshll.u32 %s2, 4
      %s20 = int_to_ptr.hbm [resolvable:$true] %s19
      %s21 = sshll.u32 [#allocation3], 4
      %s22 = int_to_ptr.vmem [resolvable:$true] %s21
      %27 = dma.hbm_to_vmem [thread:$0]  %s20, 7680, %s22, [#allocation4], 512, 512, 32
    $region13: #{tpu_custom_call.1} parent=1 // pred_fallthru
      _
    // Predicated region
    $region14: #{tpu_custom_call.1} parent=1 // pred_check
      _
    $region15: #{tpu_custom_call.1} parent=1 // pred_check_branch
      %29 = sbr.rel (0) target = $region17
    $region16: #{tpu_custom_call.1} parent=1 // pred_region
      _
    $region17: #{tpu_custom_call.1} parent=1 // pred_fallthru
      _
    // Predicated region
    $region18: #{tpu_custom_call.1} parent=1 // pred_check
      _
    $region19: #{tpu_custom_call.1} parent=1 // pred_check_branch
      %31 = sbr.rel (0) target = $region21
    $region20: #{tpu_custom_call.1} parent=1 // pred_region
      %33 = dma.done [#allocation4], 7680
    $region21: #{tpu_custom_call.1} parent=1 // pred_fallthru
      _
    %vm34 = vcmask 326656
    %35 = vst.msk [vmem:[#allocation2] sm:$0xff] %vm34, 0.0
    %36 = vst.msk [vmem:[#allocation2 + $0x8] sm:$0xff] %vm34, 0.0
    %37 = vst.msk [vmem:[#allocation2 + $0x20] sm:$0xff] %vm34, 0.0
    %38 = vst.msk [vmem:[#allocation2 + $0x28] sm:$0xff] %vm34, 0.0
    %v39 = vld [vmem:[%s0] sm:$0xff]
    %v40 = vld [vmem:[%s0 + $0x8] sm:$0xff]
    %v41 = vld [vmem:[%s0 + $0x10] sm:$0xff]
    %v42 = vld [vmem:[%s0 + $0x18] sm:$0xff]
    %vm43 = vcmask 31744
    %44 = vst.msk [vmem:[#allocation2 + $0x10] sm:$0xff] %vm43, %v39
    %45 = vst.msk [vmem:[#allocation2 + $0x18] sm:$0xff] %vm43, %v40
    %46 = vst.msk [vmem:[#allocation2 + $0x30] sm:$0xff] %vm43, %v41
    %47 = vst.msk [vmem:[#allocation2 + $0x38] sm:$0xff] %vm43, %v42
    %v48 = vld [vmem:[#allocation2 + $0xe] sm:$0xff]
    %v49 = vld [vmem:[#allocation2 + $0x16] sm:$0xff]
    %v50 = vld [vmem:[#allocation2 + $0x2e] sm:$0xff]
    %v51 = vld [vmem:[#allocation2 + $0x36] sm:$0xff]
    %v52 = vld [vmem:[#allocation2 + $0xf] sm:$0xff]
    %v53 = vld [vmem:[#allocation2 + $0x17] sm:$0xff]
    %v54 = vld [vmem:[#allocation2 + $0x2f] sm:$0xff]
    %v55 = vld [vmem:[#allocation2 + $0x37] sm:$0xff]
    %v56 = vld [vmem:[#allocation2 + $0x10] sm:$0xff]
    %v57 = vld [vmem:[#allocation2 + $0x18] sm:$0xff]
    %v58 = vld [vmem:[#allocation2 + $0x30] sm:$0xff]
    %v59 = vld [vmem:[#allocation2 + $0x38] sm:$0xff]
    %64 = vrot.lane.b32.xlu0 %v52, 4
    %v65 = vpop.permute.xlu0 %64
    %66 = vrot.lane.b32.xlu0 %v53, 4
    %v67 = vpop.permute.xlu0 %66
    %68 = vrot.lane.b32.xlu0 %v54, 4
    %v69 = vpop.permute.xlu0 %68
    %70 = vrot.lane.b32.xlu0 %v55, 4
    %v71 = vpop.permute.xlu0 %70
    %80 = vrot.lane.b32.xlu0 %v56, 8
    %v81 = vpop.permute.xlu0 %80
    %82 = vrot.lane.b32.xlu0 %v57, 8
    %v83 = vpop.permute.xlu0 %82
    %84 = vrot.lane.b32.xlu0 %v58, 8
    %v85 = vpop.permute.xlu0 %84
    %86 = vrot.lane.b32.xlu0 %v59, 8
    %v87 = vpop.permute.xlu0 %86
    %v92 = vsel %vm43, %v48, %v65
    %v93 = vsel %vm43, %v49, %v67
    %v94 = vsel %vm43, %v50, %v69
    %v95 = vsel %vm43, %v51, %v71
    %vm96 = vcmask 64512
    %v97 = vsel %vm96, %v92, %v81
    %v98 = vsel %vm96, %v93, %v83
    %v99 = vsel %vm96, %v94, %v85
    %v100 = vsel %vm96, %v95, %v87
    %v101 = vld [vmem:[#allocation3] sm:$0xff]
    %v102 = vld [vmem:[#allocation3 + $0x20] sm:$0xf]
    %v103 = vld [vmem:[%s3] sm:$0x1]
    %v104 = vperm.slane %v103, 0
    %vm105 = vcmask 97280
    %v107 = vsel %vm105, %v97, 0
    %v110 = vsel %vm105, %v98, 0
    %v113 = vsel %vm105, %v99, 0
    %v116 = vsel %vm105, %v100, 0
    %vm118 = vcmask 1043456
    %v120 = vsel %vm118, %v102, 0
    %122 = vmatpush.msra.mxu0 0.0
    %123 = vmatpush.msra.mxu0 0.0
    %124 = vmatpush.msra.mxu0 0.0
    %125 = vmatpush.msra.mxu0 0.0
    %126 = vmatpush.msra.mxu0 0.0
    %127 = vmatpush.msra.mxu0 0.0
    %128 = vmatpush.msra.mxu0 0.0
    %129 = vmatpush.msra.mxu0 0.0
    %130 = vmatpush.msra.mxu0 0.0
    %131 = vmatpush.msra.mxu0 0.0
    %132 = vmatpush.msra.mxu0 0.0
    %133 = vmatpush.msra.mxu0 0.0
    %134 = vmatpush.msra.mxu0 0.0
    %135 = vmatpush.msra.mxu0 0.0
    %136 = vmatpush.msra.mxu0 %v120
    %137 = vmatpush.msra.mxu0 %v101
    %138 = vmatmul.f32.gmra.mxu0 %v107
    %v139 = vpop.f32.mrf.mxu0
    %v140 = vadd.f32 %v104, %v139
    %141 = vmatmul.f32.gmra.mxu0 %v110
    %v142 = vpop.f32.mrf.mxu0
    %v143 = vadd.f32 %v104, %v142
    %144 = vmatmul.f32.gmra.mxu0 %v113
    %v145 = vpop.f32.mrf.mxu0
    %v146 = vadd.f32 %v104, %v145
    %147 = vmatmul.f32.gmra.mxu0 %v116
    %v148 = vpop.f32.mrf.mxu0
    %v149 = vadd.f32 %v104, %v148
    %150 = vdwg.mxu0
    %vm151 = vcmp.gt.f32.partialorder %v140, 0.0
    %vm152 = vcmp.gt.f32.partialorder %v143, 0.0
    %vm153 = vcmp.gt.f32.partialorder %v146, 0.0
    %vm154 = vcmp.gt.f32.partialorder %v149, 0.0
    %v155 = vmul.f32 %v140, 0.01
    %v156 = vmul.f32 %v143, 0.01
    %v157 = vmul.f32 %v146, 0.01
    %v158 = vmul.f32 %v149, 0.01
    %v159 = vsel %vm151, %v140, %v155
    %v160 = vsel %vm152, %v143, %v156
    %v161 = vsel %vm153, %v146, %v157
    %v162 = vsel %vm154, %v149, %v158
    %163 = vst.msk [vmem:[#allocation2 + $0x10] sm:$0xff] %vm34, %v159
    %164 = vst.msk [vmem:[#allocation2 + $0x18] sm:$0xff] %vm34, %v160
    %165 = vst.msk [vmem:[#allocation2 + $0x30] sm:$0xff] %vm34, %v161
    %166 = vst.msk [vmem:[#allocation2 + $0x38] sm:$0xff] %vm34, %v162
    %v167 = vld [vmem:[#allocation2 + $0xe] sm:$0xff]
    %v168 = vld [vmem:[#allocation2 + $0x16] sm:$0xff]
    %v169 = vld [vmem:[#allocation2 + $0x2e] sm:$0xff]
    %v170 = vld [vmem:[#allocation2 + $0x36] sm:$0xff]
    %v171 = vld [vmem:[#allocation2 + $0xf] sm:$0xff]
    %v172 = vld [vmem:[#allocation2 + $0x17] sm:$0xff]
    %v173 = vld [vmem:[#allocation2 + $0x2f] sm:$0xff]
    %v174 = vld [vmem:[#allocation2 + $0x37] sm:$0xff]
    %v175 = vld [vmem:[#allocation2 + $0x10] sm:$0xff]
    %v176 = vld [vmem:[#allocation2 + $0x18] sm:$0xff]
    %v177 = vld [vmem:[#allocation2 + $0x30] sm:$0xff]
    %v178 = vld [vmem:[#allocation2 + $0x38] sm:$0xff]
    %183 = vrot.lane.b32.xlu0 %v171, 40
    %v184 = vpop.permute.xlu0 %183
    %185 = vrot.lane.b32.xlu0 %v172, 40
    %v186 = vpop.permute.xlu0 %185
    %187 = vrot.lane.b32.xlu0 %v173, 40
    %v188 = vpop.permute.xlu0 %187
    %189 = vrot.lane.b32.xlu0 %v174, 40
    %v190 = vpop.permute.xlu0 %189
    %199 = vrot.lane.b32.xlu0 %v175, 80
    %v200 = vpop.permute.xlu0 %199
    %201 = vrot.lane.b32.xlu0 %v176, 80
    %v202 = vpop.permute.xlu0 %201
    %203 = vrot.lane.b32.xlu0 %v177, 80
    %v204 = vpop.permute.xlu0 %203
    %205 = vrot.lane.b32.xlu0 %v178, 80
    %v206 = vpop.permute.xlu0 %205
    %v211 = vsel %vm34, %v167, %v184
    %v212 = vsel %vm34, %v168, %v186
    %v213 = vsel %vm34, %v169, %v188
    %v214 = vsel %vm34, %v170, %v190
    %vm215 = vcmask 654336
    %v216 = vsel %vm215, %v211, %v200
    %v217 = vsel %vm215, %v212, %v202
    %v218 = vsel %vm215, %v213, %v204
    %v219 = vsel %vm215, %v214, %v206
    %v220 = vld [vmem:[#allocation3] sm:$0xff]
    %v221 = vld [vmem:[#allocation3 + $0x20] sm:$0xff]
    %v222 = vld [vmem:[#allocation3 + $0x40] sm:$0xff]
    %v223 = vld [vmem:[#allocation3 + $0x60] sm:$0xff]
    %v224 = vld [vmem:[#allocation3 + $0x80] sm:$0xff]
    %v225 = vld [vmem:[#allocation3 + $0xa0] sm:$0xff]
    %v226 = vld [vmem:[#allocation3 + $0xc0] sm:$0xff]
    %v227 = vld [vmem:[#allocation3 + $0xe0] sm:$0xff]
    %v228 = vld [vmem:[#allocation3 + $0x100] sm:$0xff]
    %v229 = vld [vmem:[#allocation3 + $0x120] sm:$0xff]
    %v230 = vld [vmem:[#allocation3 + $0x140] sm:$0xff]
    %v231 = vld [vmem:[#allocation3 + $0x160] sm:$0xff]
    %v232 = vld [vmem:[#allocation3 + $0x180] sm:$0xff]
    %v233 = vld [vmem:[#allocation3 + $0x1a0] sm:$0xff]
    %v234 = vld [vmem:[#allocation3 + $0x1c0] sm:$0xff]
    %v235 = vld [vmem:[%s3 + $0x1] sm:$0x1]
    %v236 = vperm.slane %v235, 0
    %252 = vrot.lane.b32.xlu0 %v220, 48
    %v253 = vpop.permute.xlu0 %252
    %254 = vrot.lane.b32.xlu0 %v221, 48
    %v255 = vpop.permute.xlu0 %254
    %256 = vrot.lane.b32.xlu0 %v222, 48
    %v257 = vpop.permute.xlu0 %256
    %258 = vrot.lane.b32.xlu0 %v223, 48
    %v259 = vpop.permute.xlu0 %258
    %260 = vrot.lane.b32.xlu0 %v224, 48
    %v261 = vpop.permute.xlu0 %260
    %262 = vrot.lane.b32.xlu0 %v225, 48
    %v263 = vpop.permute.xlu0 %262
    %264 = vrot.lane.b32.xlu0 %v226, 48
    %v265 = vpop.permute.xlu0 %264
    %266 = vrot.lane.b32.xlu0 %v227, 48
    %v267 = vpop.permute.xlu0 %266
    %268 = vrot.lane.b32.xlu0 %v228, 48
    %v269 = vpop.permute.xlu0 %268
    %270 = vrot.lane.b32.xlu0 %v229, 48
    %v271 = vpop.permute.xlu0 %270
    %272 = vrot.lane.b32.xlu0 %v230, 48
    %v273 = vpop.permute.xlu0 %272
    %274 = vrot.lane.b32.xlu0 %v231, 48
    %v275 = vpop.permute.xlu0 %274
    %276 = vrot.lane.b32.xlu0 %v232, 48
    %v277 = vpop.permute.xlu0 %276
    %278 = vrot.lane.b32.xlu0 %v233, 48
    %v279 = vpop.permute.xlu0 %278
    %280 = vrot.lane.b32.xlu0 %v234, 48
    %v281 = vpop.permute.xlu0 %280
    %vm297 = vcmask 982016
    %v299 = vsel %vm297, %v216, 0
    %v302 = vsel %vm297, %v217, 0
    %v305 = vsel %vm297, %v218, 0
    %v308 = vsel %vm297, %v219, 0
    %310 = vmatpush.msra.mxu0 0.0
    %311 = vmatpush.msra.mxu0 %v281
    %312 = vmatpush.msra.mxu0 %v279
    %313 = vmatpush.msra.mxu0 %v277
    %314 = vmatpush.msra.mxu0 %v275
    %315 = vmatpush.msra.mxu0 %v273
    %316 = vmatpush.msra.mxu0 %v271
    %317 = vmatpush.msra.mxu0 %v269
    %318 = vmatpush.msra.mxu0 %v267
    %319 = vmatpush.msra.mxu0 %v265
    %320 = vmatpush.msra.mxu0 %v263
    %321 = vmatpush.msra.mxu0 %v261
    %322 = vmatpush.msra.mxu0 %v259
    %323 = vmatpush.msra.mxu0 %v257
    %324 = vmatpush.msra.mxu0 %v255
    %325 = vmatpush.msra.mxu0 %v253
    %326 = vmatmul.f32.gmra.mxu0 %v299
    %v327 = vpop.f32.mrf.mxu0
    %v328 = vadd.f32 %v236, %v327
    %329 = vmatmul.f32.gmra.mxu0 %v302
    %v330 = vpop.f32.mrf.mxu0
    %v331 = vadd.f32 %v236, %v330
    %332 = vmatmul.f32.gmra.mxu0 %v305
    %v333 = vpop.f32.mrf.mxu0
    %v334 = vadd.f32 %v236, %v333
    %335 = vmatmul.f32.gmra.mxu0 %v308
    %v336 = vpop.f32.mrf.mxu0
    %v337 = vadd.f32 %v236, %v336
    %338 = vdwg.mxu0
    %vm339 = vcmp.gt.f32.partialorder %v328, 0.0
    %vm340 = vcmp.gt.f32.partialorder %v331, 0.0
    %vm341 = vcmp.gt.f32.partialorder %v334, 0.0
    %vm342 = vcmp.gt.f32.partialorder %v337, 0.0
    %v343 = vmul.f32 %v328, 0.01
    %v344 = vmul.f32 %v331, 0.01
    %v345 = vmul.f32 %v334, 0.01
    %v346 = vmul.f32 %v337, 0.01
    %v347 = vsel %vm339, %v328, %v343
    %v348 = vsel %vm340, %v331, %v344
    %v349 = vsel %vm341, %v334, %v345
    %v350 = vsel %vm342, %v337, %v346
    %355 = vrot.lane.b32.xlu0 %v140, 88
    %v356 = vpop.permute.xlu0 %355
    %357 = vrot.lane.b32.xlu0 %v143, 88
    %v358 = vpop.permute.xlu0 %357
    %359 = vrot.lane.b32.xlu0 %v146, 88
    %v360 = vpop.permute.xlu0 %359
    %361 = vrot.lane.b32.xlu0 %v149, 88
    %v362 = vpop.permute.xlu0 %361
    %v367 = vadd.f32 %v347, %v356
    %v368 = vadd.f32 %v348, %v358
    %v369 = vadd.f32 %v349, %v360
    %v370 = vadd.f32 %v350, %v362
    %371 = vst.msk [vmem:[#allocation2 + $0x10] sm:$0xff] %vm34, %v367
    %372 = vst.msk [vmem:[#allocation2 + $0x18] sm:$0xff] %vm34, %v368
    %373 = vst.msk [vmem:[#allocation2 + $0x30] sm:$0xff] %vm34, %v369
    %374 = vst.msk [vmem:[#allocation2 + $0x38] sm:$0xff] %vm34, %v370
    %v375 = vld [vmem:[#allocation2 + $0xc] sm:$0xff]
    %v376 = vld [vmem:[#allocation2 + $0x14] sm:$0xff]
    %v377 = vld [vmem:[#allocation2 + $0x2c] sm:$0xff]
    %v378 = vld [vmem:[#allocation2 + $0x34] sm:$0xff]
    %v379 = vld [vmem:[#allocation2 + $0xe] sm:$0xff]
    %v380 = vld [vmem:[#allocation2 + $0x16] sm:$0xff]
    %v381 = vld [vmem:[#allocation2 + $0x2e] sm:$0xff]
    %v382 = vld [vmem:[#allocation2 + $0x36] sm:$0xff]
    %v383 = vld [vmem:[#allocation2 + $0x10] sm:$0xff]
    %v384 = vld [vmem:[#allocation2 + $0x18] sm:$0xff]
    %v385 = vld [vmem:[#allocation2 + $0x30] sm:$0xff]
    %v386 = vld [vmem:[#allocation2 + $0x38] sm:$0xff]
    %391 = vrot.lane.b32.xlu0 %v379, 40
    %v392 = vpop.permute.xlu0 %391
    %393 = vrot.lane.b32.xlu0 %v380, 40
    %v394 = vpop.permute.xlu0 %393
    %395 = vrot.lane.b32.xlu0 %v381, 40
    %v396 = vpop.permute.xlu0 %395
    %397 = vrot.lane.b32.xlu0 %v382, 40
    %v398 = vpop.permute.xlu0 %397
    %407 = vrot.lane.b32.xlu0 %v383, 80
    %v408 = vpop.permute.xlu0 %407
    %409 = vrot.lane.b32.xlu0 %v384, 80
    %v410 = vpop.permute.xlu0 %409
    %411 = vrot.lane.b32.xlu0 %v385, 80
    %v412 = vpop.permute.xlu0 %411
    %413 = vrot.lane.b32.xlu0 %v386, 80
    %v414 = vpop.permute.xlu0 %413
    %v419 = vsel %vm34, %v375, %v392
    %v420 = vsel %vm34, %v376, %v394
    %v421 = vsel %vm34, %v377, %v396
    %v422 = vsel %vm34, %v378, %v398
    %v423 = vsel %vm215, %v419, %v408
    %v424 = vsel %vm215, %v420, %v410
    %v425 = vsel %vm215, %v421, %v412
    %v426 = vsel %vm215, %v422, %v414
    %v427 = vld [vmem:[#allocation3] sm:$0xff]
    %v428 = vld [vmem:[#allocation3 + $0x8] sm:$0xff]
    %v429 = vld [vmem:[#allocation3 + $0x20] sm:$0xff]
    %v430 = vld [vmem:[#allocation3 + $0x28] sm:$0xff]
    %v431 = vld [vmem:[#allocation3 + $0x40] sm:$0xff]
    %v432 = vld [vmem:[#allocation3 + $0x48] sm:$0xff]
    %v433 = vld [vmem:[#allocation3 + $0x60] sm:$0xff]
    %v434 = vld [vmem:[#allocation3 + $0x68] sm:$0xff]
    %v435 = vld [vmem:[#allocation3 + $0x80] sm:$0xff]
    %v436 = vld [vmem:[#allocation3 + $0x88] sm:$0xff]
    %v437 = vld [vmem:[#allocation3 + $0xa0] sm:$0xff]
    %v438 = vld [vmem:[#allocation3 + $0xa8] sm:$0xff]
    %v439 = vld [vmem:[#allocation3 + $0xc0] sm:$0xff]
    %v440 = vld [vmem:[#allocation3 + $0xc8] sm:$0xff]
    %v441 = vld [vmem:[#allocation3 + $0xe0] sm:$0xff]
    %v442 = vld [vmem:[#allocation3 + $0xe8] sm:$0xff]
    %v443 = vld [vmem:[#allocation3 + $0x100] sm:$0xff]
    %v444 = vld [vmem:[#allocation3 + $0x108] sm:$0xff]
    %v445 = vld [vmem:[#allocation3 + $0x120] sm:$0xff]
    %v446 = vld [vmem:[#allocation3 + $0x128] sm:$0xff]
    %v447 = vld [vmem:[#allocation3 + $0x140] sm:$0xff]
    %v448 = vld [vmem:[#allocation3 + $0x148] sm:$0xff]
    %v449 = vld [vmem:[#allocation3 + $0x160] sm:$0xff]
    %v450 = vld [vmem:[#allocation3 + $0x168] sm:$0xff]
    %v451 = vld [vmem:[#allocation3 + $0x180] sm:$0xff]
    %v452 = vld [vmem:[#allocation3 + $0x188] sm:$0xff]
    %v453 = vld [vmem:[#allocation3 + $0x1a0] sm:$0xff]
    %v454 = vld [vmem:[#allocation3 + $0x1a8] sm:$0xff]
    %v455 = vld [vmem:[#allocation3 + $0x1c0] sm:$0xff]
    %v456 = vld [vmem:[#allocation3 + $0x1c8] sm:$0xff]
    %v457 = vld [vmem:[%s3 + $0x2] sm:$0x1]
    %v458 = vperm.slane %v457, 0
    %489 = vrot.lane.b32.xlu0 %v427, 8
    %v490 = vpop.permute.xlu0 %489
    %491 = vrot.lane.b32.xlu0 %v428, 8
    %v492 = vpop.permute.xlu0 %491
    %493 = vrot.lane.b32.xlu0 %v429, 8
    %v494 = vpop.permute.xlu0 %493
    %495 = vrot.lane.b32.xlu0 %v430, 8
    %v496 = vpop.permute.xlu0 %495
    %497 = vrot.lane.b32.xlu0 %v431, 8
    %v498 = vpop.permute.xlu0 %497
    %499 = vrot.lane.b32.xlu0 %v432, 8
    %v500 = vpop.permute.xlu0 %499
    %501 = vrot.lane.b32.xlu0 %v433, 8
    %v502 = vpop.permute.xlu0 %501
    %503 = vrot.lane.b32.xlu0 %v434, 8
    %v504 = vpop.permute.xlu0 %503
    %505 = vrot.lane.b32.xlu0 %v435, 8
    %v506 = vpop.permute.xlu0 %505
    %507 = vrot.lane.b32.xlu0 %v436, 8
    %v508 = vpop.permute.xlu0 %507
    %509 = vrot.lane.b32.xlu0 %v437, 8
    %v510 = vpop.permute.xlu0 %509
    %511 = vrot.lane.b32.xlu0 %v438, 8
    %v512 = vpop.permute.xlu0 %511
    %513 = vrot.lane.b32.xlu0 %v439, 8
    %v514 = vpop.permute.xlu0 %513
    %515 = vrot.lane.b32.xlu0 %v440, 8
    %v516 = vpop.permute.xlu0 %515
    %517 = vrot.lane.b32.xlu0 %v441, 8
    %v518 = vpop.permute.xlu0 %517
    %519 = vrot.lane.b32.xlu0 %v442, 8
    %v520 = vpop.permute.xlu0 %519
    %521 = vrot.lane.b32.xlu0 %v443, 8
    %v522 = vpop.permute.xlu0 %521
    %523 = vrot.lane.b32.xlu0 %v444, 8
    %v524 = vpop.permute.xlu0 %523
    %525 = vrot.lane.b32.xlu0 %v445, 8
    %v526 = vpop.permute.xlu0 %525
    %527 = vrot.lane.b32.xlu0 %v446, 8
    %v528 = vpop.permute.xlu0 %527
    %529 = vrot.lane.b32.xlu0 %v447, 8
    %v530 = vpop.permute.xlu0 %529
    %531 = vrot.lane.b32.xlu0 %v448, 8
    %v532 = vpop.permute.xlu0 %531
    %533 = vrot.lane.b32.xlu0 %v449, 8
    %v534 = vpop.permute.xlu0 %533
    %535 = vrot.lane.b32.xlu0 %v450, 8
    %v536 = vpop.permute.xlu0 %535
    %537 = vrot.lane.b32.xlu0 %v451, 8
    %v538 = vpop.permute.xlu0 %537
    %539 = vrot.lane.b32.xlu0 %v452, 8
    %v540 = vpop.permute.xlu0 %539
    %541 = vrot.lane.b32.xlu0 %v453, 8
    %v542 = vpop.permute.xlu0 %541
    %543 = vrot.lane.b32.xlu0 %v454, 8
    %v544 = vpop.permute.xlu0 %543
    %545 = vrot.lane.b32.xlu0 %v455, 8
    %v546 = vpop.permute.xlu0 %545
    %547 = vrot.lane.b32.xlu0 %v456, 8
    %v548 = vpop.permute.xlu0 %547
    %v549 = vsel %vm96, %v490, %v492
    %v550 = vsel %vm96, %v494, %v496
    %v551 = vsel %vm96, %v498, %v500
    %v552 = vsel %vm96, %v502, %v504
    %v553 = vsel %vm96, %v506, %v508
    %v554 = vsel %vm96, %v510, %v512
    %v555 = vsel %vm96, %v514, %v516
    %v556 = vsel %vm96, %v518, %v520
    %v557 = vsel %vm96, %v522, %v524
    %v558 = vsel %vm96, %v526, %v528
    %v559 = vsel %vm96, %v530, %v532
    %v560 = vsel %vm96, %v534, %v536
    %v561 = vsel %vm96, %v538, %v540
    %v562 = vsel %vm96, %v542, %v544
    %v563 = vsel %vm96, %v546, %v548
    %v580 = vsel %vm297, %v423, 0
    %v583 = vsel %vm297, %v424, 0
    %v586 = vsel %vm297, %v425, 0
    %v589 = vsel %vm297, %v426, 0
    %591 = vmatpush.msra.mxu0 0.0
    %592 = vmatpush.msra.mxu0 %v563
    %593 = vmatpush.msra.mxu0 %v562
    %594 = vmatpush.msra.mxu0 %v561
    %595 = vmatpush.msra.mxu0 %v560
    %596 = vmatpush.msra.mxu0 %v559
    %597 = vmatpush.msra.mxu0 %v558
    %598 = vmatpush.msra.mxu0 %v557
    %599 = vmatpush.msra.mxu0 %v556
    %600 = vmatpush.msra.mxu0 %v555
    %601 = vmatpush.msra.mxu0 %v554
    %602 = vmatpush.msra.mxu0 %v553
    %603 = vmatpush.msra.mxu0 %v552
    %604 = vmatpush.msra.mxu0 %v551
    %605 = vmatpush.msra.mxu0 %v550
    %606 = vmatpush.msra.mxu0 %v549
    %607 = vmatmul.f32.gmra.mxu0 %v580
    %v608 = vpop.f32.mrf.mxu0
    %v609 = vadd.f32 %v458, %v608
    %610 = vmatmul.f32.gmra.mxu0 %v583
    %v611 = vpop.f32.mrf.mxu0
    %v612 = vadd.f32 %v458, %v611
    %613 = vmatmul.f32.gmra.mxu0 %v586
    %v614 = vpop.f32.mrf.mxu0
    %v615 = vadd.f32 %v458, %v614
    %616 = vmatmul.f32.gmra.mxu0 %v589
    %v617 = vpop.f32.mrf.mxu0
    %v618 = vadd.f32 %v458, %v617
    %619 = vdwg.mxu0
    %vm620 = vcmp.gt.f32.partialorder %v609, 0.0
    %vm621 = vcmp.gt.f32.partialorder %v612, 0.0
    %vm622 = vcmp.gt.f32.partialorder %v615, 0.0
    %vm623 = vcmp.gt.f32.partialorder %v618, 0.0
    %v624 = vmul.f32 %v609, 0.01
    %v625 = vmul.f32 %v612, 0.01
    %v626 = vmul.f32 %v615, 0.01
    %v627 = vmul.f32 %v618, 0.01
    %v628 = vsel %vm620, %v609, %v624
    %v629 = vsel %vm621, %v612, %v625
    %v630 = vsel %vm622, %v615, %v626
    %v631 = vsel %vm623, %v618, %v627
    %632 = vst.msk [vmem:[#allocation2 + $0x10] sm:$0xff] %vm34, %v628
    %633 = vst.msk [vmem:[#allocation2 + $0x18] sm:$0xff] %vm34, %v629
    %634 = vst.msk [vmem:[#allocation2 + $0x30] sm:$0xff] %vm34, %v630
    %635 = vst.msk [vmem:[#allocation2 + $0x38] sm:$0xff] %vm34, %v631
    %v636 = vld [vmem:[#allocation2 + $0xc] sm:$0xff]
    %v637 = vld [vmem:[#allocation2 + $0x14] sm:$0xff]
    %v638 = vld [vmem:[#allocation2 + $0x2c] sm:$0xff]
    %v639 = vld [vmem:[#allocation2 + $0x34] sm:$0xff]
    %v640 = vld [vmem:[#allocation2 + $0xe] sm:$0xff]
    %v641 = vld [vmem:[#allocation2 + $0x16] sm:$0xff]
    %v642 = vld [vmem:[#allocation2 + $0x2e] sm:$0xff]
    %v643 = vld [vmem:[#allocation2 + $0x36] sm:$0xff]
    %v644 = vld [vmem:[#allocation2 + $0x10] sm:$0xff]
    %v645 = vld [vmem:[#allocation2 + $0x18] sm:$0xff]
    %v646 = vld [vmem:[#allocation2 + $0x30] sm:$0xff]
    %v647 = vld [vmem:[#allocation2 + $0x38] sm:$0xff]
    %652 = vrot.lane.b32.xlu0 %v640, 40
    %v653 = vpop.permute.xlu0 %652
    %654 = vrot.lane.b32.xlu0 %v641, 40
    %v655 = vpop.permute.xlu0 %654
    %656 = vrot.lane.b32.xlu0 %v642, 40
    %v657 = vpop.permute.xlu0 %656
    %658 = vrot.lane.b32.xlu0 %v643, 40
    %v659 = vpop.permute.xlu0 %658
    %668 = vrot.lane.b32.xlu0 %v644, 80
    %v669 = vpop.permute.xlu0 %668
    %670 = vrot.lane.b32.xlu0 %v645, 80
    %v671 = vpop.permute.xlu0 %670
    %672 = vrot.lane.b32.xlu0 %v646, 80
    %v673 = vpop.permute.xlu0 %672
    %674 = vrot.lane.b32.xlu0 %v647, 80
    %v675 = vpop.permute.xlu0 %674
    %v680 = vsel %vm34, %v636, %v653
    %v681 = vsel %vm34, %v637, %v655
    %v682 = vsel %vm34, %v638, %v657
    %v683 = vsel %vm34, %v639, %v659
    %v684 = vsel %vm215, %v680, %v669
    %v685 = vsel %vm215, %v681, %v671
    %v686 = vsel %vm215, %v682, %v673
    %v687 = vsel %vm215, %v683, %v675
    %v688 = vld [vmem:[#allocation3 + $0x8] sm:$0xff]
    %v689 = vld [vmem:[#allocation3 + $0x28] sm:$0xff]
    %v690 = vld [vmem:[#allocation3 + $0x48] sm:$0xff]
    %v691 = vld [vmem:[#allocation3 + $0x68] sm:$0xff]
    %v692 = vld [vmem:[#allocation3 + $0x88] sm:$0xff]
    %v693 = vld [vmem:[#allocation3 + $0xa8] sm:$0xff]
    %v694 = vld [vmem:[#allocation3 + $0xc8] sm:$0xff]
    %v695 = vld [vmem:[#allocation3 + $0xe8] sm:$0xff]
    %v696 = vld [vmem:[#allocation3 + $0x108] sm:$0xff]
    %v697 = vld [vmem:[#allocation3 + $0x128] sm:$0xff]
    %v698 = vld [vmem:[#allocation3 + $0x148] sm:$0xff]
    %v699 = vld [vmem:[#allocation3 + $0x168] sm:$0xff]
    %v700 = vld [vmem:[#allocation3 + $0x188] sm:$0xff]
    %v701 = vld [vmem:[#allocation3 + $0x1a8] sm:$0xff]
    %v702 = vld [vmem:[#allocation3 + $0x1c8] sm:$0xff]
    %v703 = vld [vmem:[%s3 + $0x3] sm:$0x1]
    %v704 = vperm.slane %v703, 0
    %720 = vrot.lane.b32.xlu0 %v688, 96
    %v721 = vpop.permute.xlu0 %720
    %722 = vrot.lane.b32.xlu0 %v689, 96
    %v723 = vpop.permute.xlu0 %722
    %724 = vrot.lane.b32.xlu0 %v690, 96
    %v725 = vpop.permute.xlu0 %724
    %726 = vrot.lane.b32.xlu0 %v691, 96
    %v727 = vpop.permute.xlu0 %726
    %728 = vrot.lane.b32.xlu0 %v692, 96
    %v729 = vpop.permute.xlu0 %728
    %730 = vrot.lane.b32.xlu0 %v693, 96
    %v731 = vpop.permute.xlu0 %730
    %732 = vrot.lane.b32.xlu0 %v694, 96
    %v733 = vpop.permute.xlu0 %732
    %734 = vrot.lane.b32.xlu0 %v695, 96
    %v735 = vpop.permute.xlu0 %734
    %736 = vrot.lane.b32.xlu0 %v696, 96
    %v737 = vpop.permute.xlu0 %736
    %738 = vrot.lane.b32.xlu0 %v697, 96
    %v739 = vpop.permute.xlu0 %738
    %740 = vrot.lane.b32.xlu0 %v698, 96
    %v741 = vpop.permute.xlu0 %740
    %742 = vrot.lane.b32.xlu0 %v699, 96
    %v743 = vpop.permute.xlu0 %742
    %744 = vrot.lane.b32.xlu0 %v700, 96
    %v745 = vpop.permute.xlu0 %744
    %746 = vrot.lane.b32.xlu0 %v701, 96
    %v747 = vpop.permute.xlu0 %746
    %748 = vrot.lane.b32.xlu0 %v702, 96
    %v749 = vpop.permute.xlu0 %748
    %v766 = vsel %vm297, %v684, 0
    %v769 = vsel %vm297, %v685, 0
    %v772 = vsel %vm297, %v686, 0
    %v775 = vsel %vm297, %v687, 0
    %777 = vmatpush.msra.mxu0 0.0
    %778 = vmatpush.msra.mxu0 %v749
    %779 = vmatpush.msra.mxu0 %v747
    %780 = vmatpush.msra.mxu0 %v745
    %781 = vmatpush.msra.mxu0 %v743
    %782 = vmatpush.msra.mxu0 %v741
    %783 = vmatpush.msra.mxu0 %v739
    %784 = vmatpush.msra.mxu0 %v737
    %785 = vmatpush.msra.mxu0 %v735
    %786 = vmatpush.msra.mxu0 %v733
    %787 = vmatpush.msra.mxu0 %v731
    %788 = vmatpush.msra.mxu0 %v729
    %789 = vmatpush.msra.mxu0 %v727
    %790 = vmatpush.msra.mxu0 %v725
    %791 = vmatpush.msra.mxu0 %v723
    %792 = vmatpush.msra.mxu0 %v721
    %793 = vmatmul.f32.gmra.mxu0 %v766
    %v794 = vpop.f32.mrf.mxu0
    %v795 = vadd.f32 %v704, %v794
    %796 = vmatmul.f32.gmra.mxu0 %v769
    %v797 = vpop.f32.mrf.mxu0
    %v798 = vadd.f32 %v704, %v797
    %799 = vmatmul.f32.gmra.mxu0 %v772
    %v800 = vpop.f32.mrf.mxu0
    %v801 = vadd.f32 %v704, %v800
    %802 = vmatmul.f32.gmra.mxu0 %v775
    %v803 = vpop.f32.mrf.mxu0
    %v804 = vadd.f32 %v704, %v803
    %805 = vdwg.mxu0
    %vm806 = vcmp.gt.f32.partialorder %v795, 0.0
    %vm807 = vcmp.gt.f32.partialorder %v798, 0.0
    %vm808 = vcmp.gt.f32.partialorder %v801, 0.0
    %vm809 = vcmp.gt.f32.partialorder %v804, 0.0
    %v810 = vmul.f32 %v795, 0.01
    %v811 = vmul.f32 %v798, 0.01
    %v812 = vmul.f32 %v801, 0.01
    %v813 = vmul.f32 %v804, 0.01
    %v814 = vsel %vm806, %v795, %v810
    %v815 = vsel %vm807, %v798, %v811
    %v816 = vsel %vm808, %v801, %v812
    %v817 = vsel %vm809, %v804, %v813
    %v818 = vadd.f32 %v814, %v383
    %v819 = vadd.f32 %v815, %v384
    %v820 = vadd.f32 %v816, %v385
    %v821 = vadd.f32 %v817, %v386
    %822 = vst.msk [vmem:[#allocation2 + $0x10] sm:$0xff] %vm34, %v818
    %823 = vst.msk [vmem:[#allocation2 + $0x18] sm:$0xff] %vm34, %v819
    %824 = vst.msk [vmem:[#allocation2 + $0x30] sm:$0xff] %vm34, %v820
    %825 = vst.msk [vmem:[#allocation2 + $0x38] sm:$0xff] %vm34, %v821
    %v826 = vld [vmem:[#allocation2 + $0x8] sm:$0xff]
    %v827 = vld [vmem:[#allocation2 + $0x10] sm:$0xff]
    %v828 = vld [vmem:[#allocation2 + $0x28] sm:$0xff]
    %v829 = vld [vmem:[#allocation2 + $0x30] sm:$0xff]
    %v830 = vld [vmem:[#allocation2 + $0xc] sm:$0xff]
    %v831 = vld [vmem:[#allocation2 + $0x14] sm:$0xff]
    %v832 = vld [vmem:[#allocation2 + $0x2c] sm:$0xff]
    %v833 = vld [vmem:[#allocation2 + $0x34] sm:$0xff]
    %v834 = vld [vmem:[#allocation2 + $0x18] sm:$0xff]
    %v835 = vld [vmem:[#allocation2 + $0x38] sm:$0xff]
    %840 = vrot.lane.b32.xlu0 %v830, 40
    %v841 = vpop.permute.xlu0 %840
    %842 = vrot.lane.b32.xlu0 %v831, 40
    %v843 = vpop.permute.xlu0 %842
    %844 = vrot.lane.b32.xlu0 %v832, 40
    %v845 = vpop.permute.xlu0 %844
    %846 = vrot.lane.b32.xlu0 %v833, 40
    %v847 = vpop.permute.xlu0 %846
    %856 = vrot.lane.b32.xlu0 %v827, 80
    %v857 = vpop.permute.xlu0 %856
    %858 = vrot.lane.b32.xlu0 %v834, 80
    %v859 = vpop.permute.xlu0 %858
    %860 = vrot.lane.b32.xlu0 %v829, 80
    %v861 = vpop.permute.xlu0 %860
    %862 = vrot.lane.b32.xlu0 %v835, 80
    %v863 = vpop.permute.xlu0 %862
    %v868 = vsel %vm34, %v826, %v841
    %v869 = vsel %vm34, %v827, %v843
    %v870 = vsel %vm34, %v828, %v845
    %v871 = vsel %vm34, %v829, %v847
    %v872 = vsel %vm215, %v868, %v857
    %v873 = vsel %vm215, %v869, %v859
    %v874 = vsel %vm215, %v870, %v861
    %v875 = vsel %vm215, %v871, %v863
    %v876 = vld [vmem:[#allocation3 + $0x8] sm:$0xff]
    %v877 = vld [vmem:[#allocation3 + $0x28] sm:$0xff]
    %v878 = vld [vmem:[#allocation3 + $0x48] sm:$0xff]
    %v879 = vld [vmem:[#allocation3 + $0x68] sm:$0xff]
    %v880 = vld [vmem:[#allocation3 + $0x88] sm:$0xff]
    %v881 = vld [vmem:[#allocation3 + $0xa8] sm:$0xff]
    %v882 = vld [vmem:[#allocation3 + $0xc8] sm:$0xff]
    %v883 = vld [vmem:[#allocation3 + $0xe8] sm:$0xff]
    %v884 = vld [vmem:[#allocation3 + $0x108] sm:$0xff]
    %v885 = vld [vmem:[#allocation3 + $0x128] sm:$0xff]
    %v886 = vld [vmem:[#allocation3 + $0x148] sm:$0xff]
    %v887 = vld [vmem:[#allocation3 + $0x168] sm:$0xff]
    %v888 = vld [vmem:[#allocation3 + $0x188] sm:$0xff]
    %v889 = vld [vmem:[#allocation3 + $0x1a8] sm:$0xff]
    %v890 = vld [vmem:[#allocation3 + $0x1c8] sm:$0xff]
    %v891 = vld [vmem:[%s3 + $0x4] sm:$0x1]
    %v892 = vperm.slane %v891, 0
    %908 = vrot.lane.b32.xlu0 %v876, 56
    %v909 = vpop.permute.xlu0 %908
    %910 = vrot.lane.b32.xlu0 %v877, 56
    %v911 = vpop.permute.xlu0 %910
    %912 = vrot.lane.b32.xlu0 %v878, 56
    %v913 = vpop.permute.xlu0 %912
    %914 = vrot.lane.b32.xlu0 %v879, 56
    %v915 = vpop.permute.xlu0 %914
    %916 = vrot.lane.b32.xlu0 %v880, 56
    %v917 = vpop.permute.xlu0 %916
    %918 = vrot.lane.b32.xlu0 %v881, 56
    %v919 = vpop.permute.xlu0 %918
    %920 = vrot.lane.b32.xlu0 %v882, 56
    %v921 = vpop.permute.xlu0 %920
    %922 = vrot.lane.b32.xlu0 %v883, 56
    %v923 = vpop.permute.xlu0 %922
    %924 = vrot.lane.b32.xlu0 %v884, 56
    %v925 = vpop.permute.xlu0 %924
    %926 = vrot.lane.b32.xlu0 %v885, 56
    %v927 = vpop.permute.xlu0 %926
    %928 = vrot.lane.b32.xlu0 %v886, 56
    %v929 = vpop.permute.xlu0 %928
    %930 = vrot.lane.b32.xlu0 %v887, 56
    %v931 = vpop.permute.xlu0 %930
    %932 = vrot.lane.b32.xlu0 %v888, 56
    %v933 = vpop.permute.xlu0 %932
    %934 = vrot.lane.b32.xlu0 %v889, 56
    %v935 = vpop.permute.xlu0 %934
    %936 = vrot.lane.b32.xlu0 %v890, 56
    %v937 = vpop.permute.xlu0 %936
    %v954 = vsel %vm297, %v872, 0
    %v957 = vsel %vm297, %v873, 0
    %v960 = vsel %vm297, %v874, 0
    %v963 = vsel %vm297, %v875, 0
    %965 = vmatpush.msra.mxu0 0.0
    %966 = vmatpush.msra.mxu0 %v937
    %967 = vmatpush.msra.mxu0 %v935
    %968 = vmatpush.msra.mxu0 %v933
    %969 = vmatpush.msra.mxu0 %v931
    %970 = vmatpush.msra.mxu0 %v929
    %971 = vmatpush.msra.mxu0 %v927
    %972 = vmatpush.msra.mxu0 %v925
    %973 = vmatpush.msra.mxu0 %v923
    %974 = vmatpush.msra.mxu0 %v921
    %975 = vmatpush.msra.mxu0 %v919
    %976 = vmatpush.msra.mxu0 %v917
    %977 = vmatpush.msra.mxu0 %v915
    %978 = vmatpush.msra.mxu0 %v913
    %979 = vmatpush.msra.mxu0 %v911
    %980 = vmatpush.msra.mxu0 %v909
    %981 = vmatmul.f32.gmra.mxu0 %v954
    %v982 = vpop.f32.mrf.mxu0
    %v983 = vadd.f32 %v892, %v982
    %984 = vmatmul.f32.gmra.mxu0 %v957
    %v985 = vpop.f32.mrf.mxu0
    %v986 = vadd.f32 %v892, %v985
    %987 = vmatmul.f32.gmra.mxu0 %v960
    %v988 = vpop.f32.mrf.mxu0
    %v989 = vadd.f32 %v892, %v988
    %990 = vmatmul.f32.gmra.mxu0 %v963
    %v991 = vpop.f32.mrf.mxu0
    %v992 = vadd.f32 %v892, %v991
    %993 = vdwg.mxu0
    %vm994 = vcmp.gt.f32.partialorder %v983, 0.0
    %vm995 = vcmp.gt.f32.partialorder %v986, 0.0
    %vm996 = vcmp.gt.f32.partialorder %v989, 0.0
    %vm997 = vcmp.gt.f32.partialorder %v992, 0.0
    %v998 = vmul.f32 %v983, 0.01
    %v999 = vmul.f32 %v986, 0.01
    %v1000 = vmul.f32 %v989, 0.01
    %v1001 = vmul.f32 %v992, 0.01
    %v1002 = vsel %vm994, %v983, %v998
    %v1003 = vsel %vm995, %v986, %v999
    %v1004 = vsel %vm996, %v989, %v1000
    %v1005 = vsel %vm997, %v992, %v1001
    %1006 = vst.msk [vmem:[#allocation2 + $0x10] sm:$0xff] %vm34, %v1002
    %1007 = vst.msk [vmem:[#allocation2 + $0x18] sm:$0xff] %vm34, %v1003
    %1008 = vst.msk [vmem:[#allocation2 + $0x30] sm:$0xff] %vm34, %v1004
    %1009 = vst.msk [vmem:[#allocation2 + $0x38] sm:$0xff] %vm34, %v1005
    %v1010 = vld [vmem:[#allocation2 + $0x8] sm:$0xff]
    %v1011 = vld [vmem:[#allocation2 + $0x10] sm:$0xff]
    %v1012 = vld [vmem:[#allocation2 + $0x28] sm:$0xff]
    %v1013 = vld [vmem:[#allocation2 + $0x30] sm:$0xff]
    %v1014 = vld [vmem:[#allocation2 + $0xc] sm:$0xff]
    %v1015 = vld [vmem:[#allocation2 + $0x14] sm:$0xff]
    %v1016 = vld [vmem:[#allocation2 + $0x2c] sm:$0xff]
    %v1017 = vld [vmem:[#allocation2 + $0x34] sm:$0xff]
    %v1018 = vld [vmem:[#allocation2 + $0x18] sm:$0xff]
    %v1019 = vld [vmem:[#allocation2 + $0x38] sm:$0xff]
    %1024 = vrot.lane.b32.xlu0 %v1014, 40
    %v1025 = vpop.permute.xlu0 %1024
    %1026 = vrot.lane.b32.xlu0 %v1015, 40
    %v1027 = vpop.permute.xlu0 %1026
    %1028 = vrot.lane.b32.xlu0 %v1016, 40
    %v1029 = vpop.permute.xlu0 %1028
    %1030 = vrot.lane.b32.xlu0 %v1017, 40
    %v1031 = vpop.permute.xlu0 %1030
    %1040 = vrot.lane.b32.xlu0 %v1011, 80
    %v1041 = vpop.permute.xlu0 %1040
    %1042 = vrot.lane.b32.xlu0 %v1018, 80
    %v1043 = vpop.permute.xlu0 %1042
    %1044 = vrot.lane.b32.xlu0 %v1013, 80
    %v1045 = vpop.permute.xlu0 %1044
    %1046 = vrot.lane.b32.xlu0 %v1019, 80
    %v1047 = vpop.permute.xlu0 %1046
    %v1052 = vsel %vm34, %v1010, %v1025
    %v1053 = vsel %vm34, %v1011, %v1027
    %v1054 = vsel %vm34, %v1012, %v1029
    %v1055 = vsel %vm34, %v1013, %v1031
    %v1056 = vsel %vm215, %v1052, %v1041
    %v1057 = vsel %vm215, %v1053, %v1043
    %v1058 = vsel %vm215, %v1054, %v1045
    %v1059 = vsel %vm215, %v1055, %v1047
    %v1060 = vld [vmem:[#allocation3 + $0x8] sm:$0xff]
    %v1061 = vld [vmem:[#allocation3 + $0x10] sm:$0xff]
    %v1062 = vld [vmem:[#allocation3 + $0x28] sm:$0xff]
    %v1063 = vld [vmem:[#allocation3 + $0x30] sm:$0xff]
    %v1064 = vld [vmem:[#allocation3 + $0x48] sm:$0xff]
    %v1065 = vld [vmem:[#allocation3 + $0x50] sm:$0xff]
    %v1066 = vld [vmem:[#allocation3 + $0x68] sm:$0xff]
    %v1067 = vld [vmem:[#allocation3 + $0x70] sm:$0xff]
    %v1068 = vld [vmem:[#allocation3 + $0x88] sm:$0xff]
    %v1069 = vld [vmem:[#allocation3 + $0x90] sm:$0xff]
    %v1070 = vld [vmem:[#allocation3 + $0xa8] sm:$0xff]
    %v1071 = vld [vmem:[#allocation3 + $0xb0] sm:$0xff]
    %v1072 = vld [vmem:[#allocation3 + $0xc8] sm:$0xff]
    %v1073 = vld [vmem:[#allocation3 + $0xd0] sm:$0xff]
    %v1074 = vld [vmem:[#allocation3 + $0xe8] sm:$0xff]
    %v1075 = vld [vmem:[#allocation3 + $0xf0] sm:$0xff]
    %v1076 = vld [vmem:[#allocation3 + $0x108] sm:$0xff]
    %v1077 = vld [vmem:[#allocation3 + $0x110] sm:$0xff]
    %v1078 = vld [vmem:[#allocation3 + $0x128] sm:$0xff]
    %v1079 = vld [vmem:[#allocation3 + $0x130] sm:$0xff]
    %v1080 = vld [vmem:[#allocation3 + $0x148] sm:$0xff]
    %v1081 = vld [vmem:[#allocation3 + $0x150] sm:$0xff]
    %v1082 = vld [vmem:[#allocation3 + $0x168] sm:$0xff]
    %v1083 = vld [vmem:[#allocation3 + $0x170] sm:$0xff]
    %v1084 = vld [vmem:[#allocation3 + $0x188] sm:$0xff]
    %v1085 = vld [vmem:[#allocation3 + $0x190] sm:$0xff]
    %v1086 = vld [vmem:[#allocation3 + $0x1a8] sm:$0xff]
    %v1087 = vld [vmem:[#allocation3 + $0x1b0] sm:$0xff]
    %v1088 = vld [vmem:[#allocation3 + $0x1c8] sm:$0xff]
    %v1089 = vld [vmem:[#allocation3 + $0x1d0] sm:$0xff]
    %v1090 = vld [vmem:[%s3 + $0x5] sm:$0x1]
    %v1091 = vperm.slane %v1090, 0
    %1122 = vrot.lane.b32.xlu0 %v1060, 16
    %v1123 = vpop.permute.xlu0 %1122
    %1124 = vrot.lane.b32.xlu0 %v1061, 16
    %v1125 = vpop.permute.xlu0 %1124
    %1126 = vrot.lane.b32.xlu0 %v1062, 16
    %v1127 = vpop.permute.xlu0 %1126
    %1128 = vrot.lane.b32.xlu0 %v1063, 16
    %v1129 = vpop.permute.xlu0 %1128
    %1130 = vrot.lane.b32.xlu0 %v1064, 16
    %v1131 = vpop.permute.xlu0 %1130
    %1132 = vrot.lane.b32.xlu0 %v1065, 16
    %v1133 = vpop.permute.xlu0 %1132
    %1134 = vrot.lane.b32.xlu0 %v1066, 16
    %v1135 = vpop.permute.xlu0 %1134
    %1136 = vrot.lane.b32.xlu0 %v1067, 16
    %v1137 = vpop.permute.xlu0 %1136
    %1138 = vrot.lane.b32.xlu0 %v1068, 16
    %v1139 = vpop.permute.xlu0 %1138
    %1140 = vrot.lane.b32.xlu0 %v1069, 16
    %v1141 = vpop.permute.xlu0 %1140
    %1142 = vrot.lane.b32.xlu0 %v1070, 16
    %v1143 = vpop.permute.xlu0 %1142
    %1144 = vrot.lane.b32.xlu0 %v1071, 16
    %v1145 = vpop.permute.xlu0 %1144
    %1146 = vrot.lane.b32.xlu0 %v1072, 16
    %v1147 = vpop.permute.xlu0 %1146
    %1148 = vrot.lane.b32.xlu0 %v1073, 16
    %v1149 = vpop.permute.xlu0 %1148
    %1150 = vrot.lane.b32.xlu0 %v1074, 16
    %v1151 = vpop.permute.xlu0 %1150
    %1152 = vrot.lane.b32.xlu0 %v1075, 16
    %v1153 = vpop.permute.xlu0 %1152
    %1154 = vrot.lane.b32.xlu0 %v1076, 16
    %v1155 = vpop.permute.xlu0 %1154
    %1156 = vrot.lane.b32.xlu0 %v1077, 16
    %v1157 = vpop.permute.xlu0 %1156
    %1158 = vrot.lane.b32.xlu0 %v1078, 16
    %v1159 = vpop.permute.xlu0 %1158
    %1160 = vrot.lane.b32.xlu0 %v1079, 16
    %v1161 = vpop.permute.xlu0 %1160
    %1162 = vrot.lane.b32.xlu0 %v1080, 16
    %v1163 = vpop.permute.xlu0 %1162
    %1164 = vrot.lane.b32.xlu0 %v1081, 16
    %v1165 = vpop.permute.xlu0 %1164
    %1166 = vrot.lane.b32.xlu0 %v1082, 16
    %v1167 = vpop.permute.xlu0 %1166
    %1168 = vrot.lane.b32.xlu0 %v1083, 16
    %v1169 = vpop.permute.xlu0 %1168
    %1170 = vrot.lane.b32.xlu0 %v1084, 16
    %v1171 = vpop.permute.xlu0 %1170
    %1172 = vrot.lane.b32.xlu0 %v1085, 16
    %v1173 = vpop.permute.xlu0 %1172
    %1174 = vrot.lane.b32.xlu0 %v1086, 16
    %v1175 = vpop.permute.xlu0 %1174
    %1176 = vrot.lane.b32.xlu0 %v1087, 16
    %v1177 = vpop.permute.xlu0 %1176
    %1178 = vrot.lane.b32.xlu0 %v1088, 16
    %v1179 = vpop.permute.xlu0 %1178
    %1180 = vrot.lane.b32.xlu0 %v1089, 16
    %v1181 = vpop.permute.xlu0 %1180
    %vm1182 = vcmask 130048
    %v1183 = vsel %vm1182, %v1123, %v1125
    %v1184 = vsel %vm1182, %v1127, %v1129
    %v1185 = vsel %vm1182, %v1131, %v1133
    %v1186 = vsel %vm1182, %v1135, %v1137
    %v1187 = vsel %vm1182, %v1139, %v1141
    %v1188 = vsel %vm1182, %v1143, %v1145
    %v1189 = vsel %vm1182, %v1147, %v1149
    %v1190 = vsel %vm1182, %v1151, %v1153
    %v1191 = vsel %vm1182, %v1155, %v1157
    %v1192 = vsel %vm1182, %v1159, %v1161
    %v1193 = vsel %vm1182, %v1163, %v1165
    %v1194 = vsel %vm1182, %v1167, %v1169
    %v1195 = vsel %vm1182, %v1171, %v1173
    %v1196 = vsel %vm1182, %v1175, %v1177
    %v1197 = vsel %vm1182, %v1179, %v1181
    %v1214 = vsel %vm297, %v1056, 0
    %v1217 = vsel %vm297, %v1057, 0
    %v1220 = vsel %vm297, %v1058, 0
    %v1223 = vsel %vm297, %v1059, 0
    %1225 = vmatpush.msra.mxu0 0.0
    %1226 = vmatpush.msra.mxu0 %v1197
    %1227 = vmatpush.msra.mxu0 %v1196
    %1228 = vmatpush.msra.mxu0 %v1195
    %1229 = vmatpush.msra.mxu0 %v1194
    %1230 = vmatpush.msra.mxu0 %v1193
    %1231 = vmatpush.msra.mxu0 %v1192
    %1232 = vmatpush.msra.mxu0 %v1191
    %1233 = vmatpush.msra.mxu0 %v1190
    %1234 = vmatpush.msra.mxu0 %v1189
    %1235 = vmatpush.msra.mxu0 %v1188
    %1236 = vmatpush.msra.mxu0 %v1187
    %1237 = vmatpush.msra.mxu0 %v1186
    %1238 = vmatpush.msra.mxu0 %v1185
    %1239 = vmatpush.msra.mxu0 %v1184
    %1240 = vmatpush.msra.mxu0 %v1183
    %1241 = vmatmul.f32.gmra.mxu0 %v1214
    %v1242 = vpop.f32.mrf.mxu0
    %v1243 = vadd.f32 %v1091, %v1242
    %1244 = vmatmul.f32.gmra.mxu0 %v1217
    %v1245 = vpop.f32.mrf.mxu0
    %v1246 = vadd.f32 %v1091, %v1245
    %1247 = vmatmul.f32.gmra.mxu0 %v1220
    %v1248 = vpop.f32.mrf.mxu0
    %v1249 = vadd.f32 %v1091, %v1248
    %1250 = vmatmul.f32.gmra.mxu0 %v1223
    %v1251 = vpop.f32.mrf.mxu0
    %v1252 = vadd.f32 %v1091, %v1251
    %1253 = vdwg.mxu0
    %vm1254 = vcmp.gt.f32.partialorder %v1243, 0.0
    %vm1255 = vcmp.gt.f32.partialorder %v1246, 0.0
    %vm1256 = vcmp.gt.f32.partialorder %v1249, 0.0
    %vm1257 = vcmp.gt.f32.partialorder %v1252, 0.0
    %v1258 = vmul.f32 %v1243, 0.01
    %v1259 = vmul.f32 %v1246, 0.01
    %v1260 = vmul.f32 %v1249, 0.01
    %v1261 = vmul.f32 %v1252, 0.01
    %v1262 = vsel %vm1254, %v1243, %v1258
    %v1263 = vsel %vm1255, %v1246, %v1259
    %v1264 = vsel %vm1256, %v1249, %v1260
    %v1265 = vsel %vm1257, %v1252, %v1261
    %v1266 = vadd.f32 %v1262, %v827
    %v1267 = vadd.f32 %v1263, %v834
    %v1268 = vadd.f32 %v1264, %v829
    %v1269 = vadd.f32 %v1265, %v835
    %1270 = vst.msk [vmem:[#allocation2 + $0x10] sm:$0xff] %vm34, %v1266
    %1271 = vst.msk [vmem:[#allocation2 + $0x18] sm:$0xff] %vm34, %v1267
    %1272 = vst.msk [vmem:[#allocation2 + $0x30] sm:$0xff] %vm34, %v1268
    %1273 = vst.msk [vmem:[#allocation2 + $0x38] sm:$0xff] %vm34, %v1269
    %v1274 = vld [vmem:[#allocation2 + $0x8] sm:$0xff]
    %v1275 = vld [vmem:[#allocation2 + $0x10] sm:$0xff]
    %v1276 = vld [vmem:[#allocation2 + $0x28] sm:$0xff]
    %v1277 = vld [vmem:[#allocation2 + $0x30] sm:$0xff]
    %v1278 = vld [vmem:[#allocation2 + $0x18] sm:$0xff]
    %v1279 = vld [vmem:[#allocation2 + $0x38] sm:$0xff]
    %1284 = vrot.lane.b32.xlu0 %v1275, 40
    %v1285 = vpop.permute.xlu0 %1284
    %1286 = vrot.lane.b32.xlu0 %v1278, 40
    %v1287 = vpop.permute.xlu0 %1286
    %1288 = vrot.lane.b32.xlu0 %v1277, 40
    %v1289 = vpop.permute.xlu0 %1288
    %1290 = vrot.lane.b32.xlu0 %v1279, 40
    %v1291 = vpop.permute.xlu0 %1290
    %v1296 = vsel %vm34, %v1274, %v1285
    %v1297 = vsel %vm34, %v1275, %v1287
    %v1298 = vsel %vm34, %v1276, %v1289
    %v1299 = vsel %vm34, %v1277, %v1291
    %v1300 = vld [vmem:[#allocation3 + $0x10] sm:$0xff]
    %v1301 = vld [vmem:[#allocation3 + $0x30] sm:$0xff]
    %v1302 = vld [vmem:[#allocation3 + $0x50] sm:$0xff]
    %v1303 = vld [vmem:[#allocation3 + $0x70] sm:$0xff]
    %v1304 = vld [vmem:[#allocation3 + $0x90] sm:$0xff]
    %v1305 = vld [vmem:[#allocation3 + $0xb0] sm:$0xff]
    %v1306 = vld [vmem:[#allocation3 + $0xd0] sm:$0xff]
    %v1307 = vld [vmem:[#allocation3 + $0xf0] sm:$0xff]
    %v1308 = vld [vmem:[#allocation3 + $0x110] sm:$0xff]
    %v1309 = vld [vmem:[#allocation3 + $0x130] sm:$0xff]
    %v1310 = vld [vmem:[%s3 + $0x6] sm:$0x1]
    %v1311 = vperm.slane %v1310, 0
    %1322 = vrot.lane.b32.xlu0 %v1300, 104
    %v1323 = vpop.permute.xlu0 %1322
    %1324 = vrot.lane.b32.xlu0 %v1301, 104
    %v1325 = vpop.permute.xlu0 %1324
    %1326 = vrot.lane.b32.xlu0 %v1302, 104
    %v1327 = vpop.permute.xlu0 %1326
    %1328 = vrot.lane.b32.xlu0 %v1303, 104
    %v1329 = vpop.permute.xlu0 %1328
    %1330 = vrot.lane.b32.xlu0 %v1304, 104
    %v1331 = vpop.permute.xlu0 %1330
    %1332 = vrot.lane.b32.xlu0 %v1305, 104
    %v1333 = vpop.permute.xlu0 %1332
    %1334 = vrot.lane.b32.xlu0 %v1306, 104
    %v1335 = vpop.permute.xlu0 %1334
    %1336 = vrot.lane.b32.xlu0 %v1307, 104
    %v1337 = vpop.permute.xlu0 %1336
    %1338 = vrot.lane.b32.xlu0 %v1308, 104
    %v1339 = vpop.permute.xlu0 %1338
    %1340 = vrot.lane.b32.xlu0 %v1309, 104
    %v1341 = vpop.permute.xlu0 %1340
    %v1353 = vsel %vm215, %v1296, 0
    %v1356 = vsel %vm215, %v1297, 0
    %v1359 = vsel %vm215, %v1298, 0
    %v1362 = vsel %vm215, %v1299, 0
    %1364 = vmatpush.msra.mxu0 0.0
    %1365 = vmatpush.msra.mxu0 0.0
    %1366 = vmatpush.msra.mxu0 0.0
    %1367 = vmatpush.msra.mxu0 0.0
    %1368 = vmatpush.msra.mxu0 0.0
    %1369 = vmatpush.msra.mxu0 0.0
    %1370 = vmatpush.msra.mxu0 %v1341
    %1371 = vmatpush.msra.mxu0 %v1339
    %1372 = vmatpush.msra.mxu0 %v1337
    %1373 = vmatpush.msra.mxu0 %v1335
    %1374 = vmatpush.msra.mxu0 %v1333
    %1375 = vmatpush.msra.mxu0 %v1331
    %1376 = vmatpush.msra.mxu0 %v1329
    %1377 = vmatpush.msra.mxu0 %v1327
    %1378 = vmatpush.msra.mxu0 %v1325
    %1379 = vmatpush.msra.mxu0 %v1323
    %1380 = vmatmul.f32.gmra.mxu0 %v1353
    %v1381 = vpop.f32.mrf.mxu0
    %v1382 = vadd.f32 %v1311, %v1381
    %1383 = vmatmul.f32.gmra.mxu0 %v1356
    %v1384 = vpop.f32.mrf.mxu0
    %v1385 = vadd.f32 %v1311, %v1384
    %1386 = vmatmul.f32.gmra.mxu0 %v1359
    %v1387 = vpop.f32.mrf.mxu0
    %v1388 = vadd.f32 %v1311, %v1387
    %1389 = vmatmul.f32.gmra.mxu0 %v1362
    %v1390 = vpop.f32.mrf.mxu0
    %v1391 = vadd.f32 %v1311, %v1390
    %1392 = vdwg.mxu0
    %vm1393 = vcmp.gt.f32.partialorder %v1382, 0.0
    %vm1394 = vcmp.gt.f32.partialorder %v1385, 0.0
    %vm1395 = vcmp.gt.f32.partialorder %v1388, 0.0
    %vm1396 = vcmp.gt.f32.partialorder %v1391, 0.0
    %v1397 = vmul.f32 %v1382, 0.01
    %v1398 = vmul.f32 %v1385, 0.01
    %v1399 = vmul.f32 %v1388, 0.01
    %v1400 = vmul.f32 %v1391, 0.01
    %v1401 = vsel %vm1393, %v1382, %v1397
    %v1402 = vsel %vm1394, %v1385, %v1398
    %v1403 = vsel %vm1395, %v1388, %v1399
    %v1404 = vsel %vm1396, %v1391, %v1400
    %vm1405 = vcmask 261120
    %1406 = vst.msk [vmem:[#allocation2 + $0x10] sm:$0xff] %vm1405, %v1401
    %1407 = vst.msk [vmem:[#allocation2 + $0x18] sm:$0xff] %vm1405, %v1402
    %1408 = vst.msk [vmem:[#allocation2 + $0x30] sm:$0xff] %vm1405, %v1403
    %1409 = vst.msk [vmem:[#allocation2 + $0x38] sm:$0xff] %vm1405, %v1404
    %v1410 = vld [vmem:[#allocation2 + $0x8] sm:$0xff]
    %v1411 = vld [vmem:[#allocation2 + $0x10] sm:$0xff]
    %v1412 = vld [vmem:[#allocation2 + $0x28] sm:$0xff]
    %v1413 = vld [vmem:[#allocation2 + $0x30] sm:$0xff]
    %v1414 = vld [vmem:[#allocation2 + $0x18] sm:$0xff]
    %v1415 = vld [vmem:[#allocation2 + $0x38] sm:$0xff]
    %1420 = vrot.lane.b32.xlu0 %v1411, 32
    %v1421 = vpop.permute.xlu0 %1420
    %1422 = vrot.lane.b32.xlu0 %v1414, 32
    %v1423 = vpop.permute.xlu0 %1422
    %1424 = vrot.lane.b32.xlu0 %v1413, 32
    %v1425 = vpop.permute.xlu0 %1424
    %1426 = vrot.lane.b32.xlu0 %v1415, 32
    %v1427 = vpop.permute.xlu0 %1426
    %v1432 = vsel %vm1405, %v1410, %v1421
    %v1433 = vsel %vm1405, %v1411, %v1423
    %v1434 = vsel %vm1405, %v1412, %v1425
    %v1435 = vsel %vm1405, %v1413, %v1427
    %v1436 = vld [vmem:[#allocation3 + $0x10] sm:$0xff]
    %v1437 = vld [vmem:[#allocation3 + $0x30] sm:$0xff]
    %v1438 = vld [vmem:[#allocation3 + $0x50] sm:$0xff]
    %v1439 = vld [vmem:[#allocation3 + $0x70] sm:$0xff]
    %v1440 = vld [vmem:[#allocation3 + $0x90] sm:$0xff]
    %v1441 = vld [vmem:[#allocation3 + $0xb0] sm:$0xff]
    %v1442 = vld [vmem:[#allocation3 + $0xd0] sm:$0xff]
    %v1443 = vld [vmem:[#allocation3 + $0xf0] sm:$0xff]
    %v1444 = vld [vmem:[%s3 + $0x7] sm:$0x1]
    %v1445 = vperm.slane %v1444, 0
    %1454 = vrot.lane.b32.xlu0 %v1436, 40
    %v1455 = vpop.permute.xlu0 %1454
    %1456 = vrot.lane.b32.xlu0 %v1437, 40
    %v1457 = vpop.permute.xlu0 %1456
    %1458 = vrot.lane.b32.xlu0 %v1438, 40
    %v1459 = vpop.permute.xlu0 %1458
    %1460 = vrot.lane.b32.xlu0 %v1439, 40
    %v1461 = vpop.permute.xlu0 %1460
    %1462 = vrot.lane.b32.xlu0 %v1440, 40
    %v1463 = vpop.permute.xlu0 %1462
    %1464 = vrot.lane.b32.xlu0 %v1441, 40
    %v1465 = vpop.permute.xlu0 %1464
    %1466 = vrot.lane.b32.xlu0 %v1442, 40
    %v1467 = vpop.permute.xlu0 %1466
    %1468 = vrot.lane.b32.xlu0 %v1443, 40
    %v1469 = vpop.permute.xlu0 %1468
    %vm1478 = vcmask 523264
    %v1480 = vsel %vm1478, %v1432, 0
    %v1483 = vsel %vm1478, %v1433, 0
    %v1486 = vsel %vm1478, %v1434, 0
    %v1489 = vsel %vm1478, %v1435, 0
    %1491 = vmatpush.msra.mxu0 0.0
    %1492 = vmatpush.msra.mxu0 0.0
    %1493 = vmatpush.msra.mxu0 0.0
    %1494 = vmatpush.msra.mxu0 0.0
    %1495 = vmatpush.msra.mxu0 0.0
    %1496 = vmatpush.msra.mxu0 0.0
    %1497 = vmatpush.msra.mxu0 0.0
    %1498 = vmatpush.msra.mxu0 0.0
    %1499 = vmatpush.msra.mxu0 %v1469
    %1500 = vmatpush.msra.mxu0 %v1467
    %1501 = vmatpush.msra.mxu0 %v1465
    %1502 = vmatpush.msra.mxu0 %v1463
    %1503 = vmatpush.msra.mxu0 %v1461
    %1504 = vmatpush.msra.mxu0 %v1459
    %1505 = vmatpush.msra.mxu0 %v1457
    %1506 = vmatpush.msra.mxu0 %v1455
    %1507 = vmatmul.f32.gmra.mxu0 %v1480
    %v1508 = vpop.f32.mrf.mxu0
    %v1509 = vadd.f32 %v1445, %v1508
    %1510 = vmatmul.f32.gmra.mxu0 %v1483
    %v1511 = vpop.f32.mrf.mxu0
    %v1512 = vadd.f32 %v1445, %v1511
    %1513 = vmatmul.f32.gmra.mxu0 %v1486
    %v1514 = vpop.f32.mrf.mxu0
    %v1515 = vadd.f32 %v1445, %v1514
    %1516 = vmatmul.f32.gmra.mxu0 %v1489
    %v1517 = vpop.f32.mrf.mxu0
    %v1518 = vadd.f32 %v1445, %v1517
    %1519 = vdwg.mxu0
    %vm1520 = vcmp.gt.f32.partialorder %v1509, 0.0
    %vm1521 = vcmp.gt.f32.partialorder %v1512, 0.0
    %vm1522 = vcmp.gt.f32.partialorder %v1515, 0.0
    %vm1523 = vcmp.gt.f32.partialorder %v1518, 0.0
    %v1524 = vmul.f32 %v1509, 0.01
    %v1525 = vmul.f32 %v1512, 0.01
    %v1526 = vmul.f32 %v1515, 0.01
    %v1527 = vmul.f32 %v1518, 0.01
    %v1528 = vsel %vm1520, %v1509, %v1524
    %v1529 = vsel %vm1521, %v1512, %v1525
    %v1530 = vsel %vm1522, %v1515, %v1526
    %v1531 = vsel %vm1523, %v1518, %v1527
    %1536 = vrot.lane.b32.xlu0 %v1382, 96
    %v1537 = vpop.permute.xlu0 %1536
    %1538 = vrot.lane.b32.xlu0 %v1385, 96
    %v1539 = vpop.permute.xlu0 %1538
    %1540 = vrot.lane.b32.xlu0 %v1388, 96
    %v1541 = vpop.permute.xlu0 %1540
    %1542 = vrot.lane.b32.xlu0 %v1391, 96
    %v1543 = vpop.permute.xlu0 %1542
    %v1548 = vadd.f32 %v1528, %v1537
    %v1549 = vadd.f32 %v1529, %v1539
    %v1550 = vadd.f32 %v1530, %v1541
    %v1551 = vadd.f32 %v1531, %v1543
    %v1552 = vsel %vm1405, %v1548, -inf
    %v1553 = vsel %vm1405, %v1549, -inf
    %v1554 = vmax.f32 %v1552, %v1553
    %v1555 = vrot.slane %v1554, 4
    %v1556 = vmax.f32 %v1554, %v1555
    %v1557 = vrot.slane %v1556, 2
    %v1558 = vmax.f32 %v1556, %v1557
    %v1559 = vrot.slane %v1558, 1
    %v1560 = vmax.f32 %v1558, %v1559
    %v1561 = vsel %vm1405, %v1550, -inf
    %v1562 = vsel %vm1405, %v1551, -inf
    %v1563 = vmax.f32 %v1561, %v1562
    %v1564 = vrot.slane %v1563, 4
    %v1565 = vmax.f32 %v1563, %v1564
    %v1566 = vrot.slane %v1565, 2
    %v1567 = vmax.f32 %v1565, %v1566
    %v1568 = vrot.slane %v1567, 1
    %v1569 = vmax.f32 %v1567, %v1568
    %v1570 = vld [vmem:[%s1] sm:$0x3]
    %vm1573 = vcmask 1041409
    %v1574 = vsel %vm1573, %v1569, %v1560
    %1577 = vrot.lane.b32.xlu0 %v1570, 32
    %v1578 = vpop.permute.xlu0 %1577
    %v1580 = vsel %vm1405, %v1574, %v1578
    %v1581 = vld [vmem:[#allocation3 + $0x10] sm:$0xff]
    %v1582 = vld [vmem:[#allocation3 + $0x18] sm:$0xff]
    %v1583 = vld [vmem:[#allocation3 + $0x30] sm:$0xff]
    %v1584 = vld [vmem:[#allocation3 + $0x38] sm:$0xff]
    %v1585 = vld [vmem:[#allocation3 + $0x50] sm:$0xff]
    %v1586 = vld [vmem:[#allocation3 + $0x58] sm:$0xff]
    %v1587 = vld [vmem:[#allocation3 + $0x70] sm:$0xff]
    %v1588 = vld [vmem:[#allocation3 + $0x78] sm:$0xff]
    %v1589 = vld [vmem:[#allocation3 + $0x90] sm:$0xf]
    %v1590 = vld [vmem:[#allocation3 + $0x98] sm:$0xf]
    %v1591 = vld [vmem:[%s3 + $0x8] sm:$0x1]
    %v1592 = vperm.slane %v1591, 0
    %1603 = vrot.lane.b32.xlu0 %v1581, 8
    %v1604 = vpop.permute.xlu0 %1603
    %1605 = vrot.lane.b32.xlu0 %v1582, 8
    %v1606 = vpop.permute.xlu0 %1605
    %1607 = vrot.lane.b32.xlu0 %v1583, 8
    %v1608 = vpop.permute.xlu0 %1607
    %1609 = vrot.lane.b32.xlu0 %v1584, 8
    %v1610 = vpop.permute.xlu0 %1609
    %1611 = vrot.lane.b32.xlu0 %v1585, 8
    %v1612 = vpop.permute.xlu0 %1611
    %1613 = vrot.lane.b32.xlu0 %v1586, 8
    %v1614 = vpop.permute.xlu0 %1613
    %1615 = vrot.lane.b32.xlu0 %v1587, 8
    %v1616 = vpop.permute.xlu0 %1615
    %1617 = vrot.lane.b32.xlu0 %v1588, 8
    %v1618 = vpop.permute.xlu0 %1617
    %1619 = vrot.lane.b32.xlu0 %v1589, 8
    %v1620 = vpop.permute.xlu0 %1619
    %1621 = vrot.lane.b32.xlu0 %v1590, 8
    %v1622 = vpop.permute.xlu0 %1621
    %v1623 = vsel %vm96, %v1604, %v1606
    %v1624 = vsel %vm96, %v1608, %v1610
    %v1625 = vsel %vm96, %v1612, %v1614
    %v1626 = vsel %vm96, %v1616, %v1618
    %v1627 = vsel %vm96, %v1620, %v1622
    %vm1632 = vcmask 293888
    %v1634 = vsel %vm1632, %v1580, 0
    %v1636 = vsel %vm118, %v1627, 0
    %1638 = vmatpush.msra.mxu0 0.0
    %1639 = vmatpush.msra.mxu0 0.0
    %1640 = vmatpush.msra.mxu0 0.0
    %1641 = vmatpush.msra.mxu0 0.0
    %1642 = vmatpush.msra.mxu0 0.0
    %1643 = vmatpush.msra.mxu0 0.0
    %1644 = vmatpush.msra.mxu0 0.0
    %1645 = vmatpush.msra.mxu0 0.0
    %1646 = vmatpush.msra.mxu0 0.0
    %1647 = vmatpush.msra.mxu0 0.0
    %1648 = vmatpush.msra.mxu0 0.0
    %1649 = vmatpush.msra.mxu0 %v1636
    %1650 = vmatpush.msra.mxu0 %v1626
    %1651 = vmatpush.msra.mxu0 %v1625
    %1652 = vmatpush.msra.mxu0 %v1624
    %1653 = vmatpush.msra.mxu0 %v1623
    %1654 = vmatmul.f32.gmra.mxu0 %v1634
    %v1655 = vpop.f32.mrf.mxu0
    %v1656 = vadd.f32 %v1592, %v1655
    %1657 = vdwg.mxu0
    %v1658 = vmax.f32 %v1656, 0.0
    %v1659 = vld [vmem:[#allocation3 + $0x18] sm:$0xff]
    %v1660 = vld [vmem:[#allocation3 + $0x38] sm:$0xff]
    %v1661 = vld [vmem:[#allocation3 + $0x58] sm:$0xff]
    %v1662 = vld [vmem:[#allocation3 + $0x78] sm:$0xff]
    %v1663 = vld [vmem:[%s3 + $0x9] sm:$0x1]
    %v1664 = vperm.slane %v1663, 0
    %1669 = vrot.lane.b32.xlu0 %v1659, 104
    %v1670 = vpop.permute.xlu0 %1669
    %1671 = vrot.lane.b32.xlu0 %v1660, 104
    %v1672 = vpop.permute.xlu0 %1671
    %1673 = vrot.lane.b32.xlu0 %v1661, 104
    %v1674 = vpop.permute.xlu0 %1673
    %1675 = vrot.lane.b32.xlu0 %v1662, 104
    %v1676 = vpop.permute.xlu0 %1675
    %v1682 = vsel %vm1405, %v1658, 0
    %1684 = vmatpush.msra.mxu0 0.0
    %1685 = vmatpush.msra.mxu0 0.0
    %1686 = vmatpush.msra.mxu0 0.0
    %1687 = vmatpush.msra.mxu0 0.0
    %1688 = vmatpush.msra.mxu0 0.0
    %1689 = vmatpush.msra.mxu0 0.0
    %1690 = vmatpush.msra.mxu0 0.0
    %1691 = vmatpush.msra.mxu0 0.0
    %1692 = vmatpush.msra.mxu0 0.0
    %1693 = vmatpush.msra.mxu0 0.0
    %1694 = vmatpush.msra.mxu0 0.0
    %1695 = vmatpush.msra.mxu0 0.0
    %1696 = vmatpush.msra.mxu0 %v1676
    %1697 = vmatpush.msra.mxu0 %v1674
    %1698 = vmatpush.msra.mxu0 %v1672
    %1699 = vmatpush.msra.mxu0 %v1670
    %1700 = vmatmul.f32.gmra.mxu0 %v1682
    %v1701 = vpop.f32.mrf.mxu0
    %v1702 = vadd.f32 %v1664, %v1701
    %1703 = vdwg.mxu0
    %v1704 = vmax.f32 %v1702, 0.0
    %v1705 = vld [vmem:[%s3 + $0xa] sm:$0x1]
    %v1706 = vperm.slane %v1705, 0
    %1707 = vrot.lane.b32.xlu0 %v1659, 72
    %v1708 = vpop.permute.xlu0 %1707
    %1709 = vrot.lane.b32.xlu0 %v1660, 72
    %v1710 = vpop.permute.xlu0 %1709
    %1711 = vrot.lane.b32.xlu0 %v1661, 72
    %v1712 = vpop.permute.xlu0 %1711
    %1713 = vrot.lane.b32.xlu0 %v1662, 72
    %v1714 = vpop.permute.xlu0 %1713
    %v1720 = vsel %vm1405, %v1704, 0
    %1722 = vmatpush.msra.mxu0 0.0
    %1723 = vmatpush.msra.mxu0 0.0
    %1724 = vmatpush.msra.mxu0 0.0
    %1725 = vmatpush.msra.mxu0 0.0
    %1726 = vmatpush.msra.mxu0 0.0
    %1727 = vmatpush.msra.mxu0 0.0
    %1728 = vmatpush.msra.mxu0 0.0
    %1729 = vmatpush.msra.mxu0 0.0
    %1730 = vmatpush.msra.mxu0 0.0
    %1731 = vmatpush.msra.mxu0 0.0
    %1732 = vmatpush.msra.mxu0 0.0
    %1733 = vmatpush.msra.mxu0 0.0
    %1734 = vmatpush.msra.mxu0 %v1714
    %1735 = vmatpush.msra.mxu0 %v1712
    %1736 = vmatpush.msra.mxu0 %v1710
    %1737 = vmatpush.msra.mxu0 %v1708
    %1738 = vmatmul.f32.gmra.mxu0 %v1720
    %v1739 = vpop.f32.mrf.mxu0
    %v1740 = vadd.f32 %v1706, %v1739
    %1741 = vdwg.mxu0
    %v1742 = vmax.f32 %v1740, 0.0
    %v1743 = vld [vmem:[%s3 + $0xb] sm:$0x1]
    %v1744 = vperm.slane %v1743, 0
    %1745 = vrot.lane.b32.xlu0 %v1659, 40
    %v1746 = vpop.permute.xlu0 %1745
    %1747 = vrot.lane.b32.xlu0 %v1660, 40
    %v1748 = vpop.permute.xlu0 %1747
    %1749 = vrot.lane.b32.xlu0 %v1661, 40
    %v1750 = vpop.permute.xlu0 %1749
    %1751 = vrot.lane.b32.xlu0 %v1662, 40
    %v1752 = vpop.permute.xlu0 %1751
    %v1758 = vsel %vm1405, %v1742, 0
    %1760 = vmatpush.msra.mxu0 0.0
    %1761 = vmatpush.msra.mxu0 0.0
    %1762 = vmatpush.msra.mxu0 0.0
    %1763 = vmatpush.msra.mxu0 0.0
    %1764 = vmatpush.msra.mxu0 0.0
    %1765 = vmatpush.msra.mxu0 0.0
    %1766 = vmatpush.msra.mxu0 0.0
    %1767 = vmatpush.msra.mxu0 0.0
    %1768 = vmatpush.msra.mxu0 0.0
    %1769 = vmatpush.msra.mxu0 0.0
    %1770 = vmatpush.msra.mxu0 0.0
    %1771 = vmatpush.msra.mxu0 0.0
    %1772 = vmatpush.msra.mxu0 %v1752
    %1773 = vmatpush.msra.mxu0 %v1750
    %1774 = vmatpush.msra.mxu0 %v1748
    %1775 = vmatpush.msra.mxu0 %v1746
    %1776 = vmatmul.f32.gmra.mxu0 %v1758
    %v1777 = vpop.f32.mrf.mxu0
    %v1778 = vadd.f32 %v1744, %v1777
    %1779 = vdwg.mxu0
    %1781 = vset.pattern.permute.xlu0 0
    %1782 = vperm.xlu0 %1781, %v1778
    %v1783 = vpop.permute.xlu0 %1782
    %1785 = vst [vmem:[#allocation6] sm:$0x3] %v1783
    // Predicated region
    $region22: #{tpu_custom_call.1} parent=1 // pred_check
      _
    $region23: #{tpu_custom_call.1} parent=1 // pred_check_branch
      %1787 = sbr.rel (0) target = $region25
    $region24: #{tpu_custom_call.1} parent=1 // pred_region
      %1789 = vsyncadd [#allocation5], 0
      %s1791 = sshll.u32 [#allocation6], 4
      %s1792 = int_to_ptr.vmem [resolvable:$true] %s1791
      %s1793 = sshll.u32 %s4, 4
      %s1794 = int_to_ptr.hbm [resolvable:$true] %s1793
      %1796 = dma.vmem_to_hbm [thread:$0]  %s1792, 32, %s1794, [#allocation5]
    $region25: #{tpu_custom_call.1} parent=1 // pred_fallthru
      _
    // Predicated region
    $region26: #{tpu_custom_call.1} parent=1 // pred_check
      _
    $region27: #{tpu_custom_call.1} parent=1 // pred_check_branch
      %1798 = sbr.rel (0) target = $region29
    $region28: #{tpu_custom_call.1} parent=1 // pred_region
      %1800 = dma.done [#allocation5], 32
    $region29: #{tpu_custom_call.1} parent=1 // pred_fallthru
      _
    %1801 = vsyncpa [#allocation4], 1
    %1802 = vsyncpa [#allocation5], 1

</llo_original>
